<compile_context>
chip_gen: v7x
topology: tpu7x:2x2x1
jax: 0.10.0
libtpu: 0.0.40
codegen_flags: <defaults>
</compile_context>

<pallas_src>
import jax
import jax.numpy as jnp
from jax.experimental import pallas as pl
from jax.experimental.pallas import tpu as pltpu

S_DIM = 35
A_DIM = 17
HIDDEN = 600

# Lane-dense padded sizes (multiples of 128 on the lane axis).
S_PAD = 128
H_PAD = 640
A_PAD = 128


def _round_up(n, m):
    return ((n + m - 1) // m) * m


def actor_kernel(x_ref, w1_ref, b1_ref, w2_ref, b2_ref, w3_ref, b3_ref, o_ref):
    # fc1 + relu : bf16 operands on the MXU, f32 accumulation + f32 elementwise
    h1 = jnp.dot(x_ref[...], w1_ref[...], preferred_element_type=jnp.float32)
    h1 = jnp.maximum(h1 + b1_ref[...], 0.0)
    # fc2 + relu
    h2 = jnp.dot(h1.astype(jnp.bfloat16), w2_ref[...],
                 preferred_element_type=jnp.float32)
    h2 = jnp.maximum(h2 + b2_ref[...], 0.0)
    # out + tanh  (lane-dense 128-wide store; wrapper slices back to 17)
    o = jnp.dot(h2.astype(jnp.bfloat16), w3_ref[...],
                preferred_element_type=jnp.float32)
    o_ref[...] = jnp.tanh(o + b3_ref[...])


def actor_forward(x, prepared_params, *, block_rows=512):
    """x: (B, S_DIM) float32 -> actions: (B, A_DIM) float32."""
    w1, b1, w2, b2, w3, b3 = prepared_params
    B = x.shape[0]

    # Row tile: at least 8 (sublane), at most block_rows.
    tm = min(block_rows, _round_up(B, 8))
    b_pad = _round_up(B, tm)

    # Pad batch + feature dims, cast matmul input to bf16.
    xp = jnp.zeros((b_pad, S_PAD), dtype=jnp.bfloat16)
    xp = xp.at[:B, :S_DIM].set(x.astype(jnp.bfloat16))

    out = pl.pallas_call(
        actor_kernel,
        out_shape=jax.ShapeDtypeStruct((b_pad, A_PAD), jnp.float32),
        grid_spec=pltpu.PrefetchScalarGridSpec(
            num_scalar_prefetch=0,
            grid=(b_pad // tm,),
            in_specs=[
                pl.BlockSpec((tm, S_PAD), lambda i: (i, 0)),      # x row tile
                pl.BlockSpec((S_PAD, H_PAD), lambda i: (0, 0)),   # w1 (resident)
                pl.BlockSpec((1, H_PAD), lambda i: (0, 0)),       # b1
                pl.BlockSpec((H_PAD, H_PAD), lambda i: (0, 0)),   # w2 (resident)
                pl.BlockSpec((1, H_PAD), lambda i: (0, 0)),       # b2
                pl.BlockSpec((H_PAD, A_PAD), lambda i: (0, 0)),   # w3 (resident)
                pl.BlockSpec((1, A_PAD), lambda i: (0, 0)),       # b3
            ],
            out_specs=pl.BlockSpec((tm, A_PAD), lambda i: (i, 0)),
        ),
        compiler_params=pltpu.CompilerParams(
            dimension_semantics=("parallel",)),
    )(xp, w1, b1, w2, b2, w3, b3)

    return out[:B, :A_DIM]


def init_params(key):
    """Mirrors the PyTorch module init:
    weights ~ Normal(0, 0.01); biases ~ Uniform(-1/sqrt(fan_in), 1/sqrt(fan_in))
    (nn.Linear default bias init).  Weights stored transposed: (in, out)."""
    ks = jax.random.split(key, 6)

    def linear(kw, kb, fan_in, fan_out):
        w = 0.01 * jax.random.normal(kw, (fan_in, fan_out), dtype=jnp.float32)
        bound = 1.0 / jnp.sqrt(jnp.float32(fan_in))
        b = jax.random.uniform(kb, (1, fan_out), dtype=jnp.float32,
                               minval=-bound, maxval=bound)
        return w, b

    w1, b1 = linear(ks[0], ks[1], S_DIM, HIDDEN)
    w2, b2 = linear(ks[2], ks[3], HIDDEN, HIDDEN)
    w3, b3 = linear(ks[4], ks[5], HIDDEN, A_DIM)
    return (w1, b1, w2, b2, w3, b3)


def prepare_params(params):
    """One-time setup: zero-pad to lane-dense shapes, cast weights to bf16,
    keep biases in f32 (they are added on the f32 accumulator)."""
    w1, b1, w2, b2, w3, b3 = params

    def pad2(a, rows, cols):
        return jnp.pad(a, ((0, rows - a.shape[0]), (0, cols - a.shape[1])))

    w1p = pad2(w1, S_PAD, H_PAD).astype(jnp.bfloat16)
    b1p = pad2(b1, 1, H_PAD)
    w2p = pad2(w2, H_PAD, H_PAD).astype(jnp.bfloat16)
    b2p = pad2(b2, 1, H_PAD)
    w3p = pad2(w3, H_PAD, A_PAD).astype(jnp.bfloat16)
    b3p = pad2(b3, 1, A_PAD)
    return (w1p, b1p, w2p, b2p, w3p, b3p)


def reference_forward_bf16(x, params):
    """Mirrors the kernel numerics (bf16 matmul operands, f32 accumulation)."""
    w1, b1, w2, b2, w3, b3 = params
    xb = x.astype(jnp.bfloat16)
    h1 = jnp.dot(xb, w1.astype(jnp.bfloat16),
                 preferred_element_type=jnp.float32) + b1
    h1 = jnp.maximum(h1, 0.0)
    h2 = jnp.dot(h1.astype(jnp.bfloat16), w2.astype(jnp.bfloat16),
                 preferred_element_type=jnp.float32) + b2
    h2 = jnp.maximum(h2, 0.0)
    o = jnp.dot(h2.astype(jnp.bfloat16), w3.astype(jnp.bfloat16),
                preferred_element_type=jnp.float32) + b3
    return jnp.tanh(o)


def reference_forward_f32(x, params):
    w1, b1, w2, b2, w3, b3 = params
    h1 = jnp.maximum(x @ w1 + b1, 0.0)
    h2 = jnp.maximum(h1 @ w2 + b2, 0.0)
    return jnp.tanh(h2 @ w3 + b3)


if __name__ == "__main__":
    key = jax.random.PRNGKey(0)
    k_params, k_x = jax.random.split(key)

    params = init_params(k_params)
    prepared = prepare_params(params)

    batch = 2
    x = jax.random.normal(k_x, (batch, S_DIM), dtype=jnp.float32)

    actions = actor_forward(x, prepared)
    actions = jax.block_until_ready(actions)
    assert actions.shape == (batch, A_DIM)

    # Tight check against a reference with matching (bf16-operand) numerics.
    ref_bf16 = reference_forward_bf16(x, params)
    assert jnp.allclose(actions, ref_bf16, atol=2e-3, rtol=2e-3)

    # Loose sanity check against the original full-f32 module semantics.
    ref_f32 = reference_forward_f32(x, params)
    assert jnp.allclose(actions, ref_f32, atol=2e-2)

    print("KERNEL_OK")
</pallas_src>

<mosaic_0001>
module attributes {stable_mosaic.version = 11 : i64} {
  func.func @actor_kernel(%arg0: i32, %arg1: memref<8x128xbf16, #tpu.memory_space<vmem>>, %arg2: memref<128x640xbf16, #tpu.memory_space<vmem>>, %arg3: memref<1x640xf32, #tpu.memory_space<vmem>>, %arg4: memref<640x640xbf16, #tpu.memory_space<vmem>>, %arg5: memref<1x640xf32, #tpu.memory_space<vmem>>, %arg6: memref<640x128xbf16, #tpu.memory_space<vmem>>, %arg7: memref<1x128xf32, #tpu.memory_space<vmem>>, %arg8: memref<8x128xf32, #tpu.memory_space<vmem>>) attributes {dimension_semantics = [#tpu.dimension_semantics<parallel>], iteration_bounds = array<i64: 1>, scalar_prefetch = 0 : i64, scratch_operands = 0 : i64, tpu.core_type = #tpu.core_type<tc>, window_params = [{transform_indices = @transform_0, window_bounds = array<i64: 8, 128>}, {pipeline_mode = #tpu.pipeline_mode<synchronous>, transform_indices = @transform_1, window_bounds = array<i64: 128, 640>}, {pipeline_mode = #tpu.pipeline_mode<synchronous>, transform_indices = @transform_2, window_bounds = array<i64: 1, 640>}, {pipeline_mode = #tpu.pipeline_mode<synchronous>, transform_indices = @transform_3, window_bounds = array<i64: 640, 640>}, {pipeline_mode = #tpu.pipeline_mode<synchronous>, transform_indices = @transform_4, window_bounds = array<i64: 1, 640>}, {pipeline_mode = #tpu.pipeline_mode<synchronous>, transform_indices = @transform_5, window_bounds = array<i64: 640, 128>}, {pipeline_mode = #tpu.pipeline_mode<synchronous>, transform_indices = @transform_6, window_bounds = array<i64: 1, 128>}, {transform_indices = @transform_7, window_bounds = array<i64: 8, 128>}]} {
    %c0 = arith.constant 0 : index
    %c0_0 = arith.constant 0 : index
    %0 = vector.load %arg1[%c0, %c0_0] : memref<8x128xbf16, #tpu.memory_space<vmem>>, vector<8x128xbf16>
    %c0_1 = arith.constant 0 : index
    %c0_2 = arith.constant 0 : index
    %1 = vector.load %arg2[%c0_1, %c0_2] : memref<128x640xbf16, #tpu.memory_space<vmem>>, vector<128x640xbf16>
    %cst = arith.constant dense<0.000000e+00> : vector<8x640xf32>
    %2 = tpu.matmul %0, %1, %cst {dimension_numbers = #tpu.dot_dimension_numbers<[1], [0], [0], [1], [0, 0, 1, 1], [], []>} : vector<8x128xbf16>, vector<128x640xbf16>, vector<8x640xf32> -> vector<8x640xf32>
    %c0_3 = arith.constant 0 : index
    %c0_4 = arith.constant 0 : index
    %3 = vector.load %arg3[%c0_3, %c0_4] : memref<1x640xf32, #tpu.memory_space<vmem>>, vector<1x640xf32>
    %4 = vector.broadcast %3 : vector<1x640xf32> to vector<8x640xf32>
    %5 = arith.addf %2, %4 : vector<8x640xf32>
    %cst_5 = arith.constant 0.000000e+00 : f32
    %6 = vector.broadcast %cst_5 : f32 to vector<8x640xf32>
    %7 = arith.maximumf %5, %6 : vector<8x640xf32>
    %8 = arith.truncf %7 : vector<8x640xf32> to vector<8x640xbf16>
    %c0_6 = arith.constant 0 : index
    %c0_7 = arith.constant 0 : index
    %9 = vector.load %arg4[%c0_6, %c0_7] : memref<640x640xbf16, #tpu.memory_space<vmem>>, vector<640x640xbf16>
    %cst_8 = arith.constant dense<0.000000e+00> : vector<8x640xf32>
    %10 = tpu.matmul %8, %9, %cst_8 {dimension_numbers = #tpu.dot_dimension_numbers<[1], [0], [0], [1], [0, 0, 1, 1], [], []>} : vector<8x640xbf16>, vector<640x640xbf16>, vector<8x640xf32> -> vector<8x640xf32>
    %c0_9 = arith.constant 0 : index
    %c0_10 = arith.constant 0 : index
    %11 = vector.load %arg5[%c0_9, %c0_10] : memref<1x640xf32, #tpu.memory_space<vmem>>, vector<1x640xf32>
    %12 = vector.broadcast %11 : vector<1x640xf32> to vector<8x640xf32>
    %13 = arith.addf %10, %12 : vector<8x640xf32>
    %cst_11 = arith.constant 0.000000e+00 : f32
    %14 = vector.broadcast %cst_11 : f32 to vector<8x640xf32>
    %15 = arith.maximumf %13, %14 : vector<8x640xf32>
    %16 = arith.truncf %15 : vector<8x640xf32> to vector<8x640xbf16>
    %c0_12 = arith.constant 0 : index
    %c0_13 = arith.constant 0 : index
    %17 = vector.load %arg6[%c0_12, %c0_13] : memref<640x128xbf16, #tpu.memory_space<vmem>>, vector<640x128xbf16>
    %cst_14 = arith.constant dense<0.000000e+00> : vector<8x128xf32>
    %18 = tpu.matmul %16, %17, %cst_14 {dimension_numbers = #tpu.dot_dimension_numbers<[1], [0], [0], [1], [0, 0, 1, 1], [], []>} : vector<8x640xbf16>, vector<640x128xbf16>, vector<8x128xf32> -> vector<8x128xf32>
    %c0_15 = arith.constant 0 : index
    %c0_16 = arith.constant 0 : index
    %19 = vector.load %arg7[%c0_15, %c0_16] : memref<1x128xf32, #tpu.memory_space<vmem>>, vector<1x128xf32>
    %20 = vector.broadcast %19 : vector<1x128xf32> to vector<8x128xf32>
    %21 = arith.addf %18, %20 : vector<8x128xf32>
    %22 = math.tanh %21 : vector<8x128xf32>
    %c0_17 = arith.constant 0 : index
    %c0_18 = arith.constant 0 : index
    %23 = vector.load %arg8[%c0_17, %c0_18] : memref<8x128xf32, #tpu.memory_space<vmem>>, vector<8x128xf32>
    tpu.vector_store %arg8[%c0_17, %c0_18], %22 {strides = array<i32>} : memref<8x128xf32, #tpu.memory_space<vmem>>, vector<8x128xf32>,
    return
  }
  func.func @transform_0(%arg0: i32) -> (i32, i32) {
    %c0_i32 = arith.constant 0 : i32
    %c0_i32_0 = arith.constant 0 : i32
    return %arg0, %c0_i32 : i32, i32
  }
  func.func @transform_1(%arg0: i32) -> (i32, i32) {
    %c0_i32 = arith.constant 0 : i32
    %c0_i32_0 = arith.constant 0 : i32
    %c0_i32_1 = arith.constant 0 : i32
    return %c0_i32, %c0_i32_0 : i32, i32
  }
  func.func @transform_2(%arg0: i32) -> (i32, i32) {
    %c0_i32 = arith.constant 0 : i32
    %c0_i32_0 = arith.constant 0 : i32
    %c0_i32_1 = arith.constant 0 : i32
    return %c0_i32, %c0_i32_0 : i32, i32
  }
  func.func @transform_3(%arg0: i32) -> (i32, i32) {
    %c0_i32 = arith.constant 0 : i32
    %c0_i32_0 = arith.constant 0 : i32
    %c0_i32_1 = arith.constant 0 : i32
    return %c0_i32, %c0_i32_0 : i32, i32
  }
  func.func @transform_4(%arg0: i32) -> (i32, i32) {
    %c0_i32 = arith.constant 0 : i32
    %c0_i32_0 = arith.constant 0 : i32
    %c0_i32_1 = arith.constant 0 : i32
    return %c0_i32, %c0_i32_0 : i32, i32
  }
  func.func @transform_5(%arg0: i32) -> (i32, i32) {
    %c0_i32 = arith.constant 0 : i32
    %c0_i32_0 = arith.constant 0 : i32
    %c0_i32_1 = arith.constant 0 : i32
    return %c0_i32, %c0_i32_0 : i32, i32
  }
  func.func @transform_6(%arg0: i32) -> (i32, i32) {
    %c0_i32 = arith.constant 0 : i32
    %c0_i32_0 = arith.constant 0 : i32
    %c0_i32_1 = arith.constant 0 : i32
    return %c0_i32, %c0_i32_0 : i32, i32
  }
  func.func @transform_7(%arg0: i32) -> (i32, i32) {
    %c0_i32 = arith.constant 0 : i32
    %c0_i32_0 = arith.constant 0 : i32
    return %arg0, %c0_i32 : i32, i32
  }
}

</mosaic_0001>

<llo_original>
// kernel: tpu_custom_call.1
$region0: #{tpu_custom_call.1}
  #allocation0 [shape = 'u32[]', space=smem, size = 0x4, offset = 0x4, fixed_abs, tag = 'smem constant byte address 0x4 - core index']
  #allocation1 [shape = 'u32[144,128]{1,0:T(1,128)}', space=vmem, size = 0x12000, scoped, tag = 'internal scratch']
  %s0 = inlined_call_operand.hbm [shape: bf16[8,128], index: 0, kind: input, shape index: {}]
  %s1 = inlined_call_operand.hbm [shape: bf16[128,640], index: 1, kind: input, shape index: {}]
  %s2 = inlined_call_operand.vmem [shape: f32[1,640], index: 2, kind: input, shape index: {}]
  %s3 = inlined_call_operand.hbm [shape: bf16[640,640], index: 3, kind: input, shape index: {}]
  %s4 = inlined_call_operand.vmem [shape: f32[1,640], index: 4, kind: input, shape index: {}]
  %s5 = inlined_call_operand.hbm [shape: bf16[640,128], index: 5, kind: input, shape index: {}]
  %s6 = inlined_call_operand.vmem [shape: f32[1,128], index: 6, kind: input, shape index: {}]
  %s7 = inlined_call_operand.hbm [shape: f32[8,128], index: 7, kind: output, shape index: {}]
  %s8 = sld [smem:[#allocation0]]
  $region54: #{tpu_custom_call.1} parent=0
    _
  %s10 = ssub.s32 1, %s8
  %s11 = scalar_select 0, %s10, %s8
  $region1: #{tpu_custom_call.1} parent=0
    #allocation2 [shape = 'u8[2048]{0}', space=vmem, size = 0x800, scoped, tag = 'input window, operand 0, single buffered']
    #allocation3 [shape = 's32[1]{0}', space=sflag, size = 0x4, scoped, tag = 'scoped memory for tpu_custom_call.1']
    #allocation4 [shape = 's32[1]{0}', space=sflag, size = 0x4, scoped, tag = 'scoped memory for tpu_custom_call.1']
    #allocation5 [shape = 'u8[163840]{0}', space=vmem, size = 0x28000, scoped, tag = 'input window, operand 1, single buffered']
    #allocation6 [shape = 's32[1]{0}', space=sflag, size = 0x4, scoped, tag = 'scoped memory for tpu_custom_call.1']
    #allocation7 [shape = 'u8[819200]{0}', space=vmem, size = 0xc8000, scoped, tag = 'input window, operand 3, single buffered']
    #allocation8 [shape = 'u8[163840]{0}', space=vmem, size = 0x28000, scoped, tag = 'input window, operand 5, single buffered']
    #allocation9 [shape = 's32[1]{0}', space=sflag, size = 0x4, scoped, tag = 'scoped memory for tpu_custom_call.1']
    #allocation10 [shape = 'u8[4096]{0}', space=vmem, size = 0x1000, scoped, tag = 'output window, operand 0, single buffered']
    %12 = vsyncpa [#allocation3], 0
    %13 = vsyncpa [#allocation6], 0
    %14 = vsyncpa [#allocation9], 0
    %15 = vsyncpa [#allocation4], 0
    // Predicated region
    $region2: #{tpu_custom_call.1} parent=1 // pred_check
      _
    $region3: #{tpu_custom_call.1} parent=1 // pred_check_branch
      %17 = sbr.rel (0) target = $region5
    $region4: #{tpu_custom_call.1} parent=1 // pred_region
      %s19 = ssub.s32 64, 64
      %20 = vsyncadd [#allocation3], %s19
      %s22 = sshll.u32 [#allocation2], 4
      %s23 = int_to_ptr.vmem [resolvable:$true] %s22
      %25 = dma.hbm_to_vmem [thread:$0]  %s0, 64, %s23, [#allocation3]
    $region5: #{tpu_custom_call.1} parent=1 // pred_fallthru
      _
    // Predicated region
    $region6: #{tpu_custom_call.1} parent=1 // pred_check
      _
    $region7: #{tpu_custom_call.1} parent=1 // pred_check_branch
      %27 = sbr.rel (0) target = $region9
    $region8: #{tpu_custom_call.1} parent=1 // pred_region
      %s29 = ssub.s32 5120, 5120
      %30 = vsyncadd [#allocation6], %s29
      %s31 = sshll.u32 [#allocation5], 4
      %s32 = int_to_ptr.vmem [resolvable:$true] %s31
      %37 = dma.hbm_to_vmem [thread:$0]  %s1, 5120, %s32, [#allocation6], 320, 320, 20
    $region9: #{tpu_custom_call.1} parent=1 // pred_fallthru
      _
    // Predicated region
    $region10: #{tpu_custom_call.1} parent=1 // pred_check
      _
    $region11: #{tpu_custom_call.1} parent=1 // pred_check_branch
      %39 = sbr.rel (0) target = $region13
    $region12: #{tpu_custom_call.1} parent=1 // pred_region
      _
    $region13: #{tpu_custom_call.1} parent=1 // pred_fallthru
      _
    // Predicated region
    $region14: #{tpu_custom_call.1} parent=1 // pred_check
      _
    $region15: #{tpu_custom_call.1} parent=1 // pred_check_branch
      %41 = sbr.rel (0) target = $region17
    $region16: #{tpu_custom_call.1} parent=1 // pred_region
      %s43 = ssub.s32 25600, 25600
      %44 = vsyncadd [#allocation6], %s43
      %s45 = sshll.u32 [#allocation7], 4
      %s46 = int_to_ptr.vmem [resolvable:$true] %s45
      %51 = dma.hbm_to_vmem [thread:$0]  %s3, 25600, %s46, [#allocation6], 320, 320, 20
    $region17: #{tpu_custom_call.1} parent=1 // pred_fallthru
      _
    // Predicated region
    $region18: #{tpu_custom_call.1} parent=1 // pred_check
      _
    $region19: #{tpu_custom_call.1} parent=1 // pred_check_branch
      %53 = sbr.rel (0) target = $region21
    $region20: #{tpu_custom_call.1} parent=1 // pred_region
      _
    $region21: #{tpu_custom_call.1} parent=1 // pred_fallthru
      _
    // Predicated region
    $region22: #{tpu_custom_call.1} parent=1 // pred_check
      _
    $region23: #{tpu_custom_call.1} parent=1 // pred_check_branch
      %55 = sbr.rel (0) target = $region25
    $region24: #{tpu_custom_call.1} parent=1 // pred_region
      %s57 = ssub.s32 5120, 5120
      %58 = vsyncadd [#allocation9], %s57
      %s59 = sshll.u32 [#allocation8], 4
      %s60 = int_to_ptr.vmem [resolvable:$true] %s59
      %65 = dma.hbm_to_vmem [thread:$0]  %s5, 5120, %s60, [#allocation9], 64, 64, 4
    $region25: #{tpu_custom_call.1} parent=1 // pred_fallthru
      _
    // Predicated region
    $region26: #{tpu_custom_call.1} parent=1 // pred_check
      _
    $region27: #{tpu_custom_call.1} parent=1 // pred_check_branch
      %67 = sbr.rel (0) target = $region29
    $region28: #{tpu_custom_call.1} parent=1 // pred_region
      _
    $region29: #{tpu_custom_call.1} parent=1 // pred_fallthru
      _
    // Predicated region
    $region30: #{tpu_custom_call.1} parent=1 // pred_check
      _
    $region31: #{tpu_custom_call.1} parent=1 // pred_check_branch
      %69 = sbr.rel (0) target = $region33
    $region32: #{tpu_custom_call.1} parent=1 // pred_region
      %70 = dma.done [#allocation3], 64
    $region33: #{tpu_custom_call.1} parent=1 // pred_fallthru
      _
    // Predicated region
    $region34: #{tpu_custom_call.1} parent=1 // pred_check
      _
    $region35: #{tpu_custom_call.1} parent=1 // pred_check_branch
      %72 = sbr.rel (0) target = $region37
    $region36: #{tpu_custom_call.1} parent=1 // pred_region
      %73 = dma.done [#allocation6], 5120
    $region37: #{tpu_custom_call.1} parent=1 // pred_fallthru
      _
    // Predicated region
    $region38: #{tpu_custom_call.1} parent=1 // pred_check
      _
    $region39: #{tpu_custom_call.1} parent=1 // pred_check_branch
      %75 = sbr.rel (0) target = $region41
    $region40: #{tpu_custom_call.1} parent=1 // pred_region
      %76 = dma.done [#allocation6], 25600
    $region41: #{tpu_custom_call.1} parent=1 // pred_fallthru
      _
    // Predicated region
    $region42: #{tpu_custom_call.1} parent=1 // pred_check
      _
    $region43: #{tpu_custom_call.1} parent=1 // pred_check_branch
      %78 = sbr.rel (0) target = $region45
    $region44: #{tpu_custom_call.1} parent=1 // pred_region
      %79 = dma.done [#allocation9], 5120
    $region45: #{tpu_custom_call.1} parent=1 // pred_fallthru
      _
    %v81 = vld [vmem:[#allocation2] sm:$0xf]
    %v82 = vld [vmem:[#allocation5] sm:$0xff]
    %v83 = vld [vmem:[#allocation5 + $0x8] sm:$0xff]
    %v84 = vld [vmem:[#allocation5 + $0x10] sm:$0xf]
    %v85 = vld [vmem:[#allocation5 + $0x14] sm:$0xff]
    %v86 = vld [vmem:[#allocation5 + $0x1c] sm:$0xff]
    %v87 = vld [vmem:[#allocation5 + $0x24] sm:$0xf]
    %v88 = vld [vmem:[#allocation5 + $0x28] sm:$0xff]
    %v89 = vld [vmem:[#allocation5 + $0x30] sm:$0xff]
    %v90 = vld [vmem:[#allocation5 + $0x38] sm:$0xf]
    %v91 = vld [vmem:[#allocation5 + $0x3c] sm:$0xff]
    %v92 = vld [vmem:[#allocation5 + $0x44] sm:$0xff]
    %v93 = vld [vmem:[#allocation5 + $0x4c] sm:$0xf]
    %v94 = vld [vmem:[#allocation5 + $0x50] sm:$0xff]
    %v95 = vld [vmem:[#allocation5 + $0x58] sm:$0xff]
    %v96 = vld [vmem:[#allocation5 + $0x60] sm:$0xf]
    %v97 = vld [vmem:[#allocation5 + $0x64] sm:$0xff]
    %v98 = vld [vmem:[#allocation5 + $0x6c] sm:$0xff]
    %v99 = vld [vmem:[#allocation5 + $0x74] sm:$0xf]
    %v100 = vld [vmem:[#allocation5 + $0x78] sm:$0xff]
    %v101 = vld [vmem:[#allocation5 + $0x80] sm:$0xff]
    %v102 = vld [vmem:[#allocation5 + $0x88] sm:$0xf]
    %v103 = vld [vmem:[#allocation5 + $0x8c] sm:$0xff]
    %v104 = vld [vmem:[#allocation5 + $0x94] sm:$0xff]
    %v105 = vld [vmem:[#allocation5 + $0x9c] sm:$0xf]
    %v106 = vld [vmem:[#allocation5 + $0xa0] sm:$0xff]
    %v107 = vld [vmem:[#allocation5 + $0xa8] sm:$0xff]
    %v108 = vld [vmem:[#allocation5 + $0xb0] sm:$0xf]
    %v109 = vld [vmem:[#allocation5 + $0xb4] sm:$0xff]
    %v110 = vld [vmem:[#allocation5 + $0xbc] sm:$0xff]
    %v111 = vld [vmem:[#allocation5 + $0xc4] sm:$0xf]
    %v112 = vld [vmem:[#allocation5 + $0xc8] sm:$0xff]
    %v113 = vld [vmem:[#allocation5 + $0xd0] sm:$0xff]
    %v114 = vld [vmem:[#allocation5 + $0xd8] sm:$0xf]
    %v115 = vld [vmem:[#allocation5 + $0xdc] sm:$0xff]
    %v116 = vld [vmem:[#allocation5 + $0xe4] sm:$0xff]
    %v117 = vld [vmem:[#allocation5 + $0xec] sm:$0xf]
    %v118 = vld [vmem:[#allocation5 + $0xf0] sm:$0xff]
    %v119 = vld [vmem:[#allocation5 + $0xf8] sm:$0xff]
    %v120 = vld [vmem:[#allocation5 + $0x100] sm:$0xf]
    %v121 = vld [vmem:[#allocation5 + $0x104] sm:$0xff]
    %v122 = vld [vmem:[#allocation5 + $0x10c] sm:$0xff]
    %v123 = vld [vmem:[#allocation5 + $0x114] sm:$0xf]
    %v124 = vld [vmem:[#allocation5 + $0x118] sm:$0xff]
    %v125 = vld [vmem:[#allocation5 + $0x120] sm:$0xff]
    %v126 = vld [vmem:[#allocation5 + $0x128] sm:$0xf]
    %v127 = vld [vmem:[#allocation5 + $0x12c] sm:$0xff]
    %v128 = vld [vmem:[#allocation5 + $0x134] sm:$0xff]
    %v129 = vld [vmem:[#allocation5 + $0x13c] sm:$0xf]
    %v130 = vld [vmem:[%s2] sm:$0x1f]
    %v132 = vlaneseq
    %v133 = vshrl.u32 %v132, 7
    %v134 = vsub.s32 0, %v133
    %v135 = vrot.slane %v130, %v134
    %v136 = vlaneseq
    %v137 = vshrl.u32 %v136, 7
    %v138 = vsub.s32 1, %v137
    %v139 = vrot.slane %v130, %v138
    %v140 = vlaneseq
    %v141 = vshrl.u32 %v140, 7
    %v142 = vsub.s32 2, %v141
    %v143 = vrot.slane %v130, %v142
    %v144 = vlaneseq
    %v145 = vshrl.u32 %v144, 7
    %v146 = vsub.s32 3, %v145
    %v147 = vrot.slane %v130, %v146
    %v148 = vlaneseq
    %v149 = vshrl.u32 %v148, 7
    %v150 = vsub.s32 4, %v149
    %v151 = vrot.slane %v130, %v150
    %v205 = vunpack.c.l.b16 %v82
    %v206 = vunpack.c.h.b16 %v82
    %v207 = vunpack.c.l.b16 %v83
    %v208 = vunpack.c.h.b16 %v83
    %v209 = vunpack.c.l.b16 %v84
    %v210 = vunpack.c.l.b16 %v85
    %v211 = vunpack.c.h.b16 %v85
    %v212 = vunpack.c.l.b16 %v86
    %v213 = vunpack.c.h.b16 %v86
    %v214 = vunpack.c.l.b16 %v87
    %v215 = vunpack.c.l.b16 %v88
    %v216 = vunpack.c.h.b16 %v88
    %v217 = vunpack.c.l.b16 %v89
    %v218 = vunpack.c.h.b16 %v89
    %v219 = vunpack.c.l.b16 %v90
    %v220 = vunpack.c.l.b16 %v91
    %v221 = vunpack.c.h.b16 %v91
    %v222 = vunpack.c.l.b16 %v92
    %v223 = vunpack.c.h.b16 %v92
    %v224 = vunpack.c.l.b16 %v93
    %v225 = vunpack.c.l.b16 %v94
    %v226 = vunpack.c.h.b16 %v94
    %v227 = vunpack.c.l.b16 %v95
    %v228 = vunpack.c.h.b16 %v95
    %v229 = vunpack.c.l.b16 %v96
    %v230 = vunpack.c.l.b16 %v97
    %v231 = vunpack.c.h.b16 %v97
    %v232 = vunpack.c.l.b16 %v98
    %v233 = vunpack.c.h.b16 %v98
    %v234 = vunpack.c.l.b16 %v99
    %v235 = vunpack.c.l.b16 %v100
    %v236 = vunpack.c.h.b16 %v100
    %v237 = vunpack.c.l.b16 %v101
    %v238 = vunpack.c.h.b16 %v101
    %v239 = vunpack.c.l.b16 %v102
    %v240 = vunpack.c.l.b16 %v103
    %v241 = vunpack.c.h.b16 %v103
    %v242 = vunpack.c.l.b16 %v104
    %v243 = vunpack.c.h.b16 %v104
    %v244 = vunpack.c.l.b16 %v105
    %v245 = vunpack.c.l.b16 %v106
    %v246 = vunpack.c.h.b16 %v106
    %v247 = vunpack.c.l.b16 %v107
    %v248 = vunpack.c.h.b16 %v107
    %v249 = vunpack.c.l.b16 %v108
    %v250 = vunpack.c.l.b16 %v109
    %v251 = vunpack.c.h.b16 %v109
    %v252 = vunpack.c.l.b16 %v110
    %v253 = vunpack.c.h.b16 %v110
    %v254 = vunpack.c.l.b16 %v111
    %v255 = vunpack.c.l.b16 %v112
    %v256 = vunpack.c.h.b16 %v112
    %v257 = vunpack.c.l.b16 %v113
    %v258 = vunpack.c.h.b16 %v113
    %v259 = vunpack.c.l.b16 %v114
    %v260 = vunpack.c.l.b16 %v115
    %v261 = vunpack.c.h.b16 %v115
    %v262 = vunpack.c.l.b16 %v116
    %v263 = vunpack.c.h.b16 %v116
    %v264 = vunpack.c.l.b16 %v117
    %v265 = vunpack.c.l.b16 %v118
    %v266 = vunpack.c.h.b16 %v118
    %v267 = vunpack.c.l.b16 %v119
    %v268 = vunpack.c.h.b16 %v119
    %v269 = vunpack.c.l.b16 %v120
    %v270 = vunpack.c.l.b16 %v121
    %v271 = vunpack.c.h.b16 %v121
    %v272 = vunpack.c.l.b16 %v122
    %v273 = vunpack.c.h.b16 %v122
    %v274 = vunpack.c.l.b16 %v123
    %v275 = vunpack.c.l.b16 %v124
    %v276 = vunpack.c.h.b16 %v124
    %v277 = vunpack.c.l.b16 %v125
    %v278 = vunpack.c.h.b16 %v125
    %v279 = vunpack.c.l.b16 %v126
    %v280 = vunpack.c.l.b16 %v127
    %v281 = vunpack.c.h.b16 %v127
    %v282 = vunpack.c.l.b16 %v128
    %v283 = vunpack.c.h.b16 %v128
    %v284 = vunpack.c.l.b16 %v129
    %v285 = vpack.c.b16 %v210, %v205
    %v286 = vpack.c.b16 %v211, %v206
    %v287 = vpack.c.b16 %v212, %v207
    %v288 = vpack.c.b16 %v213, %v208
    %v289 = vpack.c.b16 %v214, %v209
    %v290 = vpack.c.b16 %v220, %v215
    %v291 = vpack.c.b16 %v221, %v216
    %v292 = vpack.c.b16 %v222, %v217
    %v293 = vpack.c.b16 %v223, %v218
    %v294 = vpack.c.b16 %v224, %v219
    %v295 = vpack.c.b16 %v230, %v225
    %v296 = vpack.c.b16 %v231, %v226
    %v297 = vpack.c.b16 %v232, %v227
    %v298 = vpack.c.b16 %v233, %v228
    %v299 = vpack.c.b16 %v234, %v229
    %v300 = vpack.c.b16 %v240, %v235
    %v301 = vpack.c.b16 %v241, %v236
    %v302 = vpack.c.b16 %v242, %v237
    %v303 = vpack.c.b16 %v243, %v238
    %v304 = vpack.c.b16 %v244, %v239
    %v305 = vpack.c.b16 %v250, %v245
    %v306 = vpack.c.b16 %v251, %v246
    %v307 = vpack.c.b16 %v252, %v247
    %v308 = vpack.c.b16 %v253, %v248
    %v309 = vpack.c.b16 %v254, %v249
    %v310 = vpack.c.b16 %v260, %v255
    %v311 = vpack.c.b16 %v261, %v256
    %v312 = vpack.c.b16 %v262, %v257
    %v313 = vpack.c.b16 %v263, %v258
    %v314 = vpack.c.b16 %v264, %v259
    %v315 = vpack.c.b16 %v270, %v265
    %v316 = vpack.c.b16 %v271, %v266
    %v317 = vpack.c.b16 %v272, %v267
    %v318 = vpack.c.b16 %v273, %v268
    %v319 = vpack.c.b16 %v274, %v269
    %v320 = vpack.c.b16 %v280, %v275
    %v321 = vpack.c.b16 %v281, %v276
    %v322 = vpack.c.b16 %v282, %v277
    %v323 = vpack.c.b16 %v283, %v278
    %v324 = vpack.c.b16 %v284, %v279
    %365 = vmatprep.subr.bf16.mxu0 %v286
    %366 = vmatpush1.bf16.msra.mxu0 %v285
    %367 = vmatprep.subr.bf16.mxu0 %v291
    %368 = vmatpush1.bf16.msra.mxu0 %v290
    %369 = vmatprep.subr.bf16.mxu0 %v296
    %370 = vmatpush1.bf16.msra.mxu0 %v295
    %371 = vmatprep.subr.bf16.mxu0 %v301
    %372 = vmatpush1.bf16.msra.mxu0 %v300
    %373 = vmatprep.subr.bf16.mxu0 %v306
    %374 = vmatpush1.bf16.msra.mxu0 %v305
    %375 = vmatprep.subr.bf16.mxu0 %v311
    %376 = vmatpush1.bf16.msra.mxu0 %v310
    %377 = vmatprep.subr.bf16.mxu0 %v316
    %378 = vmatpush1.bf16.msra.mxu0 %v315
    %379 = vmatprep.subr.bf16.mxu0 %v321
    %380 = vmatpush1.bf16.msra.mxu0 %v320
    %381 = vmatprep.subr.bf16.mxu0 0
    %382 = vmatpush1.bf16.msra.mxu0 0
    %383 = vmatprep.subr.bf16.mxu0 0
    %384 = vmatpush1.bf16.msra.mxu0 0
    %385 = vmatprep.subr.bf16.mxu0 0
    %386 = vmatpush1.bf16.msra.mxu0 0
    %387 = vmatprep.subr.bf16.mxu0 0
    %388 = vmatpush1.bf16.msra.mxu0 0
    %389 = vmatprep.subr.bf16.mxu0 0
    %390 = vmatpush1.bf16.msra.mxu0 0
    %391 = vmatprep.subr.bf16.mxu0 0
    %392 = vmatpush1.bf16.msra.mxu0 0
    %393 = vmatprep.subr.bf16.mxu0 0
    %394 = vmatpush1.bf16.msra.mxu0 0
    %395 = vmatprep.subr.bf16.mxu0 0
    %396 = vmatpush1.bf16.msra.mxu0 0
    %397 = vmatprep.mubr.bf16.mxu0 0
    %398 = vmatmul.mubr.bf16.gmra.mrb[0].mxu0 %v81
    %v399 = vpop.f32.mrb[0].mxu0
    %v400 = vadd.f32 %v135, %v399
    %v401 = vpop.f32.mrb[0].mxu0
    %v402 = vadd.f32 %v139, %v401
    %v403 = vpop.f32.mrb[0].mxu0
    %v404 = vpop.f32.mrb[0].mxu0
    %405 = vdwg.mxu0
    %406 = vmatprep.subr.bf16.mxu0 %v288
    %407 = vmatpush1.bf16.msra.mxu0 %v287
    %408 = vmatprep.subr.bf16.mxu0 %v293
    %409 = vmatpush1.bf16.msra.mxu0 %v292
    %410 = vmatprep.subr.bf16.mxu0 %v298
    %411 = vmatpush1.bf16.msra.mxu0 %v297
    %412 = vmatprep.subr.bf16.mxu0 %v303
    %413 = vmatpush1.bf16.msra.mxu0 %v302
    %414 = vmatprep.subr.bf16.mxu0 %v308
    %415 = vmatpush1.bf16.msra.mxu0 %v307
    %416 = vmatprep.subr.bf16.mxu0 %v313
    %417 = vmatpush1.bf16.msra.mxu0 %v312
    %418 = vmatprep.subr.bf16.mxu0 %v318
    %419 = vmatpush1.bf16.msra.mxu0 %v317
    %420 = vmatprep.subr.bf16.mxu0 %v323
    %421 = vmatpush1.bf16.msra.mxu0 %v322
    %422 = vmatprep.subr.bf16.mxu0 0
    %423 = vmatpush1.bf16.msra.mxu0 0
    %424 = vmatprep.subr.bf16.mxu0 0
    %425 = vmatpush1.bf16.msra.mxu0 0
    %426 = vmatprep.subr.bf16.mxu0 0
    %427 = vmatpush1.bf16.msra.mxu0 0
    %428 = vmatprep.subr.bf16.mxu0 0
    %429 = vmatpush1.bf16.msra.mxu0 0
    %430 = vmatprep.subr.bf16.mxu0 0
    %431 = vmatpush1.bf16.msra.mxu0 0
    %432 = vmatprep.subr.bf16.mxu0 0
    %433 = vmatpush1.bf16.msra.mxu0 0
    %434 = vmatprep.subr.bf16.mxu0 0
    %435 = vmatpush1.bf16.msra.mxu0 0
    %436 = vmatprep.subr.bf16.mxu0 0
    %437 = vmatpush1.bf16.msra.mxu0 0
    %438 = vmatprep.mubr.bf16.mxu0 0
    %439 = vmatmul.mubr.bf16.gmra.mrb[0].mxu0 %v81
    %v440 = vpop.f32.mrb[0].mxu0
    %v441 = vadd.f32 %v143, %v440
    %v442 = vpop.f32.mrb[0].mxu0
    %v443 = vadd.f32 %v147, %v442
    %v444 = vpop.f32.mrb[0].mxu0
    %v445 = vpop.f32.mrb[0].mxu0
    %446 = vdwg.mxu0
    %447 = vmatprep.subr.bf16.mxu0 0
    %448 = vmatpush1.bf16.msra.mxu0 %v289
    %449 = vmatprep.subr.bf16.mxu0 0
    %450 = vmatpush1.bf16.msra.mxu0 %v294
    %451 = vmatprep.subr.bf16.mxu0 0
    %452 = vmatpush1.bf16.msra.mxu0 %v299
    %453 = vmatprep.subr.bf16.mxu0 0
    %454 = vmatpush1.bf16.msra.mxu0 %v304
    %455 = vmatprep.subr.bf16.mxu0 0
    %456 = vmatpush1.bf16.msra.mxu0 %v309
    %457 = vmatprep.subr.bf16.mxu0 0
    %458 = vmatpush1.bf16.msra.mxu0 %v314
    %459 = vmatprep.subr.bf16.mxu0 0
    %460 = vmatpush1.bf16.msra.mxu0 %v319
    %461 = vmatprep.subr.bf16.mxu0 0
    %462 = vmatpush1.bf16.msra.mxu0 %v324
    %463 = vmatprep.subr.bf16.mxu0 0
    %464 = vmatpush1.bf16.msra.mxu0 0
    %465 = vmatprep.subr.bf16.mxu0 0
    %466 = vmatpush1.bf16.msra.mxu0 0
    %467 = vmatprep.subr.bf16.mxu0 0
    %468 = vmatpush1.bf16.msra.mxu0 0
    %469 = vmatprep.subr.bf16.mxu0 0
    %470 = vmatpush1.bf16.msra.mxu0 0
    %471 = vmatprep.subr.bf16.mxu0 0
    %472 = vmatpush1.bf16.msra.mxu0 0
    %473 = vmatprep.subr.bf16.mxu0 0
    %474 = vmatpush1.bf16.msra.mxu0 0
    %475 = vmatprep.subr.bf16.mxu0 0
    %476 = vmatpush1.bf16.msra.mxu0 0
    %477 = vmatprep.subr.bf16.mxu0 0
    %478 = vmatpush1.bf16.msra.mxu0 0
    %479 = vmatprep.mubr.bf16.mxu0 0
    %480 = vmatmul.mubr.bf16.gmra.mrb[0].mxu0 %v81
    %v481 = vpop.f32.mrb[0].mxu0
    %v482 = vadd.f32 %v151, %v481
    %v483 = vpop.f32.mrb[0].mxu0
    %v484 = vpop.f32.mrb[0].mxu0
    %v485 = vpop.f32.mrb[0].mxu0
    %486 = vdwg.mxu0
    %v487 = vmax.f32 %v400, 0.0
    %v488 = vmax.f32 %v402, 0.0
    %v489 = vmax.f32 %v441, 0.0
    %v490 = vmax.f32 %v443, 0.0
    %v491 = vmax.f32 %v482, 0.0
    %v492 = vpack.c.bf16 %v487, %v487
    %v493 = vpack.c.bf16 %v488, %v488
    %v494 = vpack.c.bf16 %v489, %v489
    %v495 = vpack.c.bf16 %v490, %v490
    %v496 = vpack.c.bf16 %v491, %v491
    %v497 = vld [vmem:[#allocation7] sm:$0xff]
    %v498 = vld [vmem:[#allocation7 + $0x8] sm:$0xff]
    %v499 = vld [vmem:[#allocation7 + $0x10] sm:$0xf]
    %v500 = vld [vmem:[#allocation7 + $0x14] sm:$0xff]
    %v501 = vld [vmem:[#allocation7 + $0x1c] sm:$0xff]
    %v502 = vld [vmem:[#allocation7 + $0x24] sm:$0xf]
    %v503 = vld [vmem:[#allocation7 + $0x28] sm:$0xff]
    %v504 = vld [vmem:[#allocation7 + $0x30] sm:$0xff]
    %v505 = vld [vmem:[#allocation7 + $0x38] sm:$0xf]
    %v506 = vld [vmem:[#allocation7 + $0x3c] sm:$0xff]
    %v507 = vld [vmem:[#allocation7 + $0x44] sm:$0xff]
    %v508 = vld [vmem:[#allocation7 + $0x4c] sm:$0xf]
    %v509 = vld [vmem:[#allocation7 + $0x50] sm:$0xff]
    %v510 = vld [vmem:[#allocation7 + $0x58] sm:$0xff]
    %v511 = vld [vmem:[#allocation7 + $0x60] sm:$0xf]
    %v512 = vld [vmem:[#allocation7 + $0x64] sm:$0xff]
    %v513 = vld [vmem:[#allocation7 + $0x6c] sm:$0xff]
    %v514 = vld [vmem:[#allocation7 + $0x74] sm:$0xf]
    %v515 = vld [vmem:[#allocation7 + $0x78] sm:$0xff]
    %v516 = vld [vmem:[#allocation7 + $0x80] sm:$0xff]
    %v517 = vld [vmem:[#allocation7 + $0x88] sm:$0xf]
    %v518 = vld [vmem:[#allocation7 + $0x8c] sm:$0xff]
    %v519 = vld [vmem:[#allocation7 + $0x94] sm:$0xff]
    %v520 = vld [vmem:[#allocation7 + $0x9c] sm:$0xf]
    %v521 = vld [vmem:[#allocation7 + $0xa0] sm:$0xff]
    %v522 = vld [vmem:[#allocation7 + $0xa8] sm:$0xff]
    %v523 = vld [vmem:[#allocation7 + $0xb0] sm:$0xf]
    %v524 = vld [vmem:[#allocation7 + $0xb4] sm:$0xff]
    %v525 = vld [vmem:[#allocation7 + $0xbc] sm:$0xff]
    %v526 = vld [vmem:[#allocation7 + $0xc4] sm:$0xf]
    %v527 = vld [vmem:[#allocation7 + $0xc8] sm:$0xff]
    %v528 = vld [vmem:[#allocation7 + $0xd0] sm:$0xff]
    %v529 = vld [vmem:[#allocation7 + $0xd8] sm:$0xf]
    %v530 = vld [vmem:[#allocation7 + $0xdc] sm:$0xff]
    %v531 = vld [vmem:[#allocation7 + $0xe4] sm:$0xff]
    %v532 = vld [vmem:[#allocation7 + $0xec] sm:$0xf]
    %v533 = vld [vmem:[#allocation7 + $0xf0] sm:$0xff]
    %v534 = vld [vmem:[#allocation7 + $0xf8] sm:$0xff]
    %v535 = vld [vmem:[#allocation7 + $0x100] sm:$0xf]
    %v536 = vld [vmem:[#allocation7 + $0x104] sm:$0xff]
    %v537 = vld [vmem:[#allocation7 + $0x10c] sm:$0xff]
    %v538 = vld [vmem:[#allocation7 + $0x114] sm:$0xf]
    %v539 = vld [vmem:[#allocation7 + $0x118] sm:$0xff]
    %v540 = vld [vmem:[#allocation7 + $0x120] sm:$0xff]
    %v541 = vld [vmem:[#allocation7 + $0x128] sm:$0xf]
    %v542 = vld [vmem:[#allocation7 + $0x12c] sm:$0xff]
    %v543 = vld [vmem:[#allocation7 + $0x134] sm:$0xff]
    %v544 = vld [vmem:[#allocation7 + $0x13c] sm:$0xf]
    %v545 = vld [vmem:[#allocation7 + $0x140] sm:$0xff]
    %v546 = vld [vmem:[#allocation7 + $0x148] sm:$0xff]
    %v547 = vld [vmem:[#allocation7 + $0x150] sm:$0xf]
    %v548 = vld [vmem:[#allocation7 + $0x154] sm:$0xff]
    %v549 = vld [vmem:[#allocation7 + $0x15c] sm:$0xff]
    %v550 = vld [vmem:[#allocation7 + $0x164] sm:$0xf]
    %v551 = vld [vmem:[#allocation7 + $0x168] sm:$0xff]
    %v552 = vld [vmem:[#allocation7 + $0x170] sm:$0xff]
    %v553 = vld [vmem:[#allocation7 + $0x178] sm:$0xf]
    %v554 = vld [vmem:[#allocation7 + $0x17c] sm:$0xff]
    %v555 = vld [vmem:[#allocation7 + $0x184] sm:$0xff]
    %v556 = vld [vmem:[#allocation7 + $0x18c] sm:$0xf]
    %v557 = vld [vmem:[#allocation7 + $0x190] sm:$0xff]
    %v558 = vld [vmem:[#allocation7 + $0x198] sm:$0xff]
    %v559 = vld [vmem:[#allocation7 + $0x1a0] sm:$0xf]
    %v560 = vld [vmem:[#allocation7 + $0x1a4] sm:$0xff]
    %v561 = vld [vmem:[#allocation7 + $0x1ac] sm:$0xff]
    %v562 = vld [vmem:[#allocation7 + $0x1b4] sm:$0xf]
    %v563 = vld [vmem:[#allocation7 + $0x1b8] sm:$0xff]
    %v564 = vld [vmem:[#allocation7 + $0x1c0] sm:$0xff]
    %v565 = vld [vmem:[#allocation7 + $0x1c8] sm:$0xf]
    %v566 = vld [vmem:[#allocation7 + $0x1cc] sm:$0xff]
    %v567 = vld [vmem:[#allocation7 + $0x1d4] sm:$0xff]
    %v568 = vld [vmem:[#allocation7 + $0x1dc] sm:$0xf]
    %v569 = vld [vmem:[#allocation7 + $0x1e0] sm:$0xff]
    %v570 = vld [vmem:[#allocation7 + $0x1e8] sm:$0xff]
    %v571 = vld [vmem:[#allocation7 + $0x1f0] sm:$0xf]
    %v572 = vld [vmem:[#allocation7 + $0x1f4] sm:$0xff]
    %v573 = vld [vmem:[#allocation7 + $0x1fc] sm:$0xff]
    %v574 = vld [vmem:[#allocation7 + $0x204] sm:$0xf]
    %v575 = vld [vmem:[#allocation7 + $0x208] sm:$0xff]
    %v576 = vld [vmem:[#allocation7 + $0x210] sm:$0xff]
    %v577 = vld [vmem:[#allocation7 + $0x218] sm:$0xf]
    %v578 = vld [vmem:[#allocation7 + $0x21c] sm:$0xff]
    %v579 = vld [vmem:[#allocation7 + $0x224] sm:$0xff]
    %v580 = vld [vmem:[#allocation7 + $0x22c] sm:$0xf]
    %v581 = vld [vmem:[#allocation7 + $0x230] sm:$0xff]
    %v582 = vld [vmem:[#allocation7 + $0x238] sm:$0xff]
    %v583 = vld [vmem:[#allocation7 + $0x240] sm:$0xf]
    %v584 = vld [vmem:[#allocation7 + $0x244] sm:$0xff]
    %v585 = vld [vmem:[#allocation7 + $0x24c] sm:$0xff]
    %v586 = vld [vmem:[#allocation7 + $0x254] sm:$0xf]
    %v587 = vld [vmem:[#allocation7 + $0x258] sm:$0xff]
    %v588 = vld [vmem:[#allocation7 + $0x260] sm:$0xff]
    %v589 = vld [vmem:[#allocation7 + $0x268] sm:$0xf]
    %v590 = vld [vmem:[#allocation7 + $0x26c] sm:$0xff]
    %v591 = vld [vmem:[#allocation7 + $0x274] sm:$0xff]
    %v592 = vld [vmem:[#allocation7 + $0x27c] sm:$0xf]
    %v593 = vld [vmem:[#allocation7 + $0x280] sm:$0xff]
    %v594 = vld [vmem:[#allocation7 + $0x288] sm:$0xff]
    %v595 = vld [vmem:[#allocation7 + $0x290] sm:$0xf]
    %v596 = vld [vmem:[#allocation7 + $0x294] sm:$0xff]
    %v597 = vld [vmem:[#allocation7 + $0x29c] sm:$0xff]
    %v598 = vld [vmem:[#allocation7 + $0x2a4] sm:$0xf]
    %v599 = vld [vmem:[#allocation7 + $0x2a8] sm:$0xff]
    %v600 = vld [vmem:[#allocation7 + $0x2b0] sm:$0xff]
    %v601 = vld [vmem:[#allocation7 + $0x2b8] sm:$0xf]
    %v602 = vld [vmem:[#allocation7 + $0x2bc] sm:$0xff]
    %v603 = vld [vmem:[#allocation7 + $0x2c4] sm:$0xff]
    %v604 = vld [vmem:[#allocation7 + $0x2cc] sm:$0xf]
    %v605 = vld [vmem:[#allocation7 + $0x2d0] sm:$0xff]
    %v606 = vld [vmem:[#allocation7 + $0x2d8] sm:$0xff]
    %v607 = vld [vmem:[#allocation7 + $0x2e0] sm:$0xf]
    %v608 = vld [vmem:[#allocation7 + $0x2e4] sm:$0xff]
    %v609 = vld [vmem:[#allocation7 + $0x2ec] sm:$0xff]
    %v610 = vld [vmem:[#allocation7 + $0x2f4] sm:$0xf]
    %v611 = vld [vmem:[#allocation7 + $0x2f8] sm:$0xff]
    %v612 = vld [vmem:[#allocation7 + $0x300] sm:$0xff]
    %v613 = vld [vmem:[#allocation7 + $0x308] sm:$0xf]
    %v614 = vld [vmem:[#allocation7 + $0x30c] sm:$0xff]
    %v615 = vld [vmem:[#allocation7 + $0x314] sm:$0xff]
    %v616 = vld [vmem:[#allocation7 + $0x31c] sm:$0xf]
    %v617 = vld [vmem:[#allocation7 + $0x320] sm:$0xff]
    %v618 = vld [vmem:[#allocation7 + $0x328] sm:$0xff]
    %v619 = vld [vmem:[#allocation7 + $0x330] sm:$0xf]
    %v620 = vld [vmem:[#allocation7 + $0x334] sm:$0xff]
    %v621 = vld [vmem:[#allocation7 + $0x33c] sm:$0xff]
    %v622 = vld [vmem:[#allocation7 + $0x344] sm:$0xf]
    %v623 = vld [vmem:[#allocation7 + $0x348] sm:$0xff]
    %v624 = vld [vmem:[#allocation7 + $0x350] sm:$0xff]
    %v625 = vld [vmem:[#allocation7 + $0x358] sm:$0xf]
    %v626 = vld [vmem:[#allocation7 + $0x35c] sm:$0xff]
    %v627 = vld [vmem:[#allocation7 + $0x364] sm:$0xff]
    %v628 = vld [vmem:[#allocation7 + $0x36c] sm:$0xf]
    %v629 = vld [vmem:[#allocation7 + $0x370] sm:$0xff]
    %v630 = vld [vmem:[#allocation7 + $0x378] sm:$0xff]
    %v631 = vld [vmem:[#allocation7 + $0x380] sm:$0xf]
    %v632 = vld [vmem:[#allocation7 + $0x384] sm:$0xff]
    %v633 = vld [vmem:[#allocation7 + $0x38c] sm:$0xff]
    %v634 = vld [vmem:[#allocation7 + $0x394] sm:$0xf]
    %v635 = vld [vmem:[#allocation7 + $0x398] sm:$0xff]
    %v636 = vld [vmem:[#allocation7 + $0x3a0] sm:$0xff]
    %v637 = vld [vmem:[#allocation7 + $0x3a8] sm:$0xf]
    %v638 = vld [vmem:[#allocation7 + $0x3ac] sm:$0xff]
    %v639 = vld [vmem:[#allocation7 + $0x3b4] sm:$0xff]
    %v640 = vld [vmem:[#allocation7 + $0x3bc] sm:$0xf]
    %v641 = vld [vmem:[#allocation7 + $0x3c0] sm:$0xff]
    %v642 = vld [vmem:[#allocation7 + $0x3c8] sm:$0xff]
    %v643 = vld [vmem:[#allocation7 + $0x3d0] sm:$0xf]
    %v644 = vld [vmem:[#allocation7 + $0x3d4] sm:$0xff]
    %v645 = vld [vmem:[#allocation7 + $0x3dc] sm:$0xff]
    %v646 = vld [vmem:[#allocation7 + $0x3e4] sm:$0xf]
    %v647 = vld [vmem:[#allocation7 + $0x3e8] sm:$0xff]
    %v648 = vld [vmem:[#allocation7 + $0x3f0] sm:$0xff]
    %v649 = vld [vmem:[#allocation7 + $0x3f8] sm:$0xf]
    %v650 = vld [vmem:[#allocation7 + $0x3fc] sm:$0xff]
    %v651 = vld [vmem:[#allocation7 + $0x404] sm:$0xff]
    %v652 = vld [vmem:[#allocation7 + $0x40c] sm:$0xf]
    %v653 = vld [vmem:[#allocation7 + $0x410] sm:$0xff]
    %v654 = vld [vmem:[#allocation7 + $0x418] sm:$0xff]
    %v655 = vld [vmem:[#allocation7 + $0x420] sm:$0xf]
    %v656 = vld [vmem:[#allocation7 + $0x424] sm:$0xff]
    %v657 = vld [vmem:[#allocation7 + $0x42c] sm:$0xff]
    %v658 = vld [vmem:[#allocation7 + $0x434] sm:$0xf]
    %v659 = vld [vmem:[#allocation7 + $0x438] sm:$0xff]
    %v660 = vld [vmem:[#allocation7 + $0x440] sm:$0xff]
    %v661 = vld [vmem:[#allocation7 + $0x448] sm:$0xf]
    %v662 = vld [vmem:[#allocation7 + $0x44c] sm:$0xff]
    %v663 = vld [vmem:[#allocation7 + $0x454] sm:$0xff]
    %v664 = vld [vmem:[#allocation7 + $0x45c] sm:$0xf]
    %v665 = vld [vmem:[#allocation7 + $0x460] sm:$0xff]
    %v666 = vld [vmem:[#allocation7 + $0x468] sm:$0xff]
    %v667 = vld [vmem:[#allocation7 + $0x470] sm:$0xf]
    %v668 = vld [vmem:[#allocation7 + $0x474] sm:$0xff]
    %v669 = vld [vmem:[#allocation7 + $0x47c] sm:$0xff]
    %v670 = vld [vmem:[#allocation7 + $0x484] sm:$0xf]
    %v671 = vld [vmem:[#allocation7 + $0x488] sm:$0xff]
    %v672 = vld [vmem:[#allocation7 + $0x490] sm:$0xff]
    %v673 = vld [vmem:[#allocation7 + $0x498] sm:$0xf]
    %v674 = vld [vmem:[#allocation7 + $0x49c] sm:$0xff]
    %v675 = vld [vmem:[#allocation7 + $0x4a4] sm:$0xff]
    %v676 = vld [vmem:[#allocation7 + $0x4ac] sm:$0xf]
    %v677 = vld [vmem:[#allocation7 + $0x4b0] sm:$0xff]
    %v678 = vld [vmem:[#allocation7 + $0x4b8] sm:$0xff]
    %v679 = vld [vmem:[#allocation7 + $0x4c0] sm:$0xf]
    %v680 = vld [vmem:[#allocation7 + $0x4c4] sm:$0xff]
    %v681 = vld [vmem:[#allocation7 + $0x4cc] sm:$0xff]
    %v682 = vld [vmem:[#allocation7 + $0x4d4] sm:$0xf]
    %v683 = vld [vmem:[#allocation7 + $0x4d8] sm:$0xff]
    %v684 = vld [vmem:[#allocation7 + $0x4e0] sm:$0xff]
    %v685 = vld [vmem:[#allocation7 + $0x4e8] sm:$0xf]
    %v686 = vld [vmem:[#allocation7 + $0x4ec] sm:$0xff]
    %v687 = vld [vmem:[#allocation7 + $0x4f4] sm:$0xff]
    %v688 = vld [vmem:[#allocation7 + $0x4fc] sm:$0xf]
    %v689 = vld [vmem:[#allocation7 + $0x500] sm:$0xff]
    %v690 = vld [vmem:[#allocation7 + $0x508] sm:$0xff]
    %v691 = vld [vmem:[#allocation7 + $0x510] sm:$0xf]
    %v692 = vld [vmem:[#allocation7 + $0x514] sm:$0xff]
    %v693 = vld [vmem:[#allocation7 + $0x51c] sm:$0xff]
    %v694 = vld [vmem:[#allocation7 + $0x524] sm:$0xf]
    %v695 = vld [vmem:[#allocation7 + $0x528] sm:$0xff]
    %v696 = vld [vmem:[#allocation7 + $0x530] sm:$0xff]
    %v697 = vld [vmem:[#allocation7 + $0x538] sm:$0xf]
    %v698 = vld [vmem:[#allocation7 + $0x53c] sm:$0xff]
    %v699 = vld [vmem:[#allocation7 + $0x544] sm:$0xff]
    %v700 = vld [vmem:[#allocation7 + $0x54c] sm:$0xf]
    %v701 = vld [vmem:[#allocation7 + $0x550] sm:$0xff]
    %v702 = vld [vmem:[#allocation7 + $0x558] sm:$0xff]
    %v703 = vld [vmem:[#allocation7 + $0x560] sm:$0xf]
    %v704 = vld [vmem:[#allocation7 + $0x564] sm:$0xff]
    %v705 = vld [vmem:[#allocation7 + $0x56c] sm:$0xff]
    %v706 = vld [vmem:[#allocation7 + $0x574] sm:$0xf]
    %v707 = vld [vmem:[#allocation7 + $0x578] sm:$0xff]
    %v708 = vld [vmem:[#allocation7 + $0x580] sm:$0xff]
    %v709 = vld [vmem:[#allocation7 + $0x588] sm:$0xf]
    %v710 = vld [vmem:[#allocation7 + $0x58c] sm:$0xff]
    %v711 = vld [vmem:[#allocation7 + $0x594] sm:$0xff]
    %v712 = vld [vmem:[#allocation7 + $0x59c] sm:$0xf]
    %v713 = vld [vmem:[#allocation7 + $0x5a0] sm:$0xff]
    %v714 = vld [vmem:[#allocation7 + $0x5a8] sm:$0xff]
    %v715 = vld [vmem:[#allocation7 + $0x5b0] sm:$0xf]
    %v716 = vld [vmem:[#allocation7 + $0x5b4] sm:$0xff]
    %v717 = vld [vmem:[#allocation7 + $0x5bc] sm:$0xff]
    %v718 = vld [vmem:[#allocation7 + $0x5c4] sm:$0xf]
    %v719 = vld [vmem:[#allocation7 + $0x5c8] sm:$0xff]
    %v720 = vld [vmem:[#allocation7 + $0x5d0] sm:$0xff]
    %v721 = vld [vmem:[#allocation7 + $0x5d8] sm:$0xf]
    %v722 = vld [vmem:[#allocation7 + $0x5dc] sm:$0xff]
    %v723 = vld [vmem:[#allocation7 + $0x5e4] sm:$0xff]
    %v724 = vld [vmem:[#allocation7 + $0x5ec] sm:$0xf]
    %v725 = vld [vmem:[#allocation7 + $0x5f0] sm:$0xff]
    %v726 = vld [vmem:[#allocation7 + $0x5f8] sm:$0xff]
    %v727 = vld [vmem:[#allocation7 + $0x600] sm:$0xf]
    %v728 = vld [vmem:[#allocation7 + $0x604] sm:$0xff]
    %v729 = vld [vmem:[#allocation7 + $0x60c] sm:$0xff]
    %v730 = vld [vmem:[#allocation7 + $0x614] sm:$0xf]
    %v731 = vld [vmem:[#allocation7 + $0x618] sm:$0xff]
    %v732 = vld [vmem:[#allocation7 + $0x620] sm:$0xff]
    %v733 = vld [vmem:[#allocation7 + $0x628] sm:$0xf]
    %v734 = vld [vmem:[#allocation7 + $0x62c] sm:$0xff]
    %v735 = vld [vmem:[#allocation7 + $0x634] sm:$0xff]
    %v736 = vld [vmem:[#allocation7 + $0x63c] sm:$0xf]
    %v737 = vld [vmem:[%s4] sm:$0x1f]
    %v739 = vlaneseq
    %v740 = vshrl.u32 %v739, 7
    %v741 = vsub.s32 0, %v740
    %v742 = vrot.slane %v737, %v741
    %v743 = vlaneseq
    %v744 = vshrl.u32 %v743, 7
    %v745 = vsub.s32 1, %v744
    %v746 = vrot.slane %v737, %v745
    %v747 = vlaneseq
    %v748 = vshrl.u32 %v747, 7
    %v749 = vsub.s32 2, %v748
    %v750 = vrot.slane %v737, %v749
    %v751 = vlaneseq
    %v752 = vshrl.u32 %v751, 7
    %v753 = vsub.s32 3, %v752
    %v754 = vrot.slane %v737, %v753
    %v755 = vlaneseq
    %v756 = vshrl.u32 %v755, 7
    %v757 = vsub.s32 4, %v756
    %v758 = vrot.slane %v737, %v757
    %v1004 = vunpack.c.l.b16 %v497
    %v1005 = vunpack.c.h.b16 %v497
    %v1006 = vunpack.c.l.b16 %v498
    %v1007 = vunpack.c.h.b16 %v498
    %v1008 = vunpack.c.l.b16 %v499
    %v1009 = vunpack.c.l.b16 %v500
    %v1010 = vunpack.c.h.b16 %v500
    %v1011 = vunpack.c.l.b16 %v501
    %v1012 = vunpack.c.h.b16 %v501
    %v1013 = vunpack.c.l.b16 %v502
    %v1014 = vunpack.c.l.b16 %v503
    %v1015 = vunpack.c.h.b16 %v503
    %v1016 = vunpack.c.l.b16 %v504
    %v1017 = vunpack.c.h.b16 %v504
    %v1018 = vunpack.c.l.b16 %v505
    %v1019 = vunpack.c.l.b16 %v506
    %v1020 = vunpack.c.h.b16 %v506
    %v1021 = vunpack.c.l.b16 %v507
    %v1022 = vunpack.c.h.b16 %v507
    %v1023 = vunpack.c.l.b16 %v508
    %v1024 = vunpack.c.l.b16 %v509
    %v1025 = vunpack.c.h.b16 %v509
    %v1026 = vunpack.c.l.b16 %v510
    %v1027 = vunpack.c.h.b16 %v510
    %v1028 = vunpack.c.l.b16 %v511
    %v1029 = vunpack.c.l.b16 %v512
    %v1030 = vunpack.c.h.b16 %v512
    %v1031 = vunpack.c.l.b16 %v513
    %v1032 = vunpack.c.h.b16 %v513
    %v1033 = vunpack.c.l.b16 %v514
    %v1034 = vunpack.c.l.b16 %v515
    %v1035 = vunpack.c.h.b16 %v515
    %v1036 = vunpack.c.l.b16 %v516
    %v1037 = vunpack.c.h.b16 %v516
    %v1038 = vunpack.c.l.b16 %v517
    %v1039 = vunpack.c.l.b16 %v518
    %v1040 = vunpack.c.h.b16 %v518
    %v1041 = vunpack.c.l.b16 %v519
    %v1042 = vunpack.c.h.b16 %v519
    %v1043 = vunpack.c.l.b16 %v520
    %v1044 = vunpack.c.l.b16 %v521
    %v1045 = vunpack.c.h.b16 %v521
    %v1046 = vunpack.c.l.b16 %v522
    %v1047 = vunpack.c.h.b16 %v522
    %v1048 = vunpack.c.l.b16 %v523
    %v1049 = vunpack.c.l.b16 %v524
    %v1050 = vunpack.c.h.b16 %v524
    %v1051 = vunpack.c.l.b16 %v525
    %v1052 = vunpack.c.h.b16 %v525
    %v1053 = vunpack.c.l.b16 %v526
    %v1054 = vunpack.c.l.b16 %v527
    %v1055 = vunpack.c.h.b16 %v527
    %v1056 = vunpack.c.l.b16 %v528
    %v1057 = vunpack.c.h.b16 %v528
    %v1058 = vunpack.c.l.b16 %v529
    %v1059 = vunpack.c.l.b16 %v530
    %v1060 = vunpack.c.h.b16 %v530
    %v1061 = vunpack.c.l.b16 %v531
    %v1062 = vunpack.c.h.b16 %v531
    %v1063 = vunpack.c.l.b16 %v532
    %v1064 = vunpack.c.l.b16 %v533
    %v1065 = vunpack.c.h.b16 %v533
    %v1066 = vunpack.c.l.b16 %v534
    %v1067 = vunpack.c.h.b16 %v534
    %v1068 = vunpack.c.l.b16 %v535
    %v1069 = vunpack.c.l.b16 %v536
    %v1070 = vunpack.c.h.b16 %v536
    %v1071 = vunpack.c.l.b16 %v537
    %v1072 = vunpack.c.h.b16 %v537
    %v1073 = vunpack.c.l.b16 %v538
    %v1074 = vunpack.c.l.b16 %v539
    %v1075 = vunpack.c.h.b16 %v539
    %v1076 = vunpack.c.l.b16 %v540
    %v1077 = vunpack.c.h.b16 %v540
    %v1078 = vunpack.c.l.b16 %v541
    %v1079 = vunpack.c.l.b16 %v542
    %v1080 = vunpack.c.h.b16 %v542
    %v1081 = vunpack.c.l.b16 %v543
    %v1082 = vunpack.c.h.b16 %v543
    %v1083 = vunpack.c.l.b16 %v544
    %v1084 = vunpack.c.l.b16 %v545
    %v1085 = vunpack.c.h.b16 %v545
    %v1086 = vunpack.c.l.b16 %v546
    %v1087 = vunpack.c.h.b16 %v546
    %v1088 = vunpack.c.l.b16 %v547
    %v1089 = vunpack.c.l.b16 %v548
    %v1090 = vunpack.c.h.b16 %v548
    %v1091 = vunpack.c.l.b16 %v549
    %v1092 = vunpack.c.h.b16 %v549
    %v1093 = vunpack.c.l.b16 %v550
    %v1094 = vunpack.c.l.b16 %v551
    %v1095 = vunpack.c.h.b16 %v551
    %v1096 = vunpack.c.l.b16 %v552
    %v1097 = vunpack.c.h.b16 %v552
    %v1098 = vunpack.c.l.b16 %v553
    %v1099 = vunpack.c.l.b16 %v554
    %v1100 = vunpack.c.h.b16 %v554
    %v1101 = vunpack.c.l.b16 %v555
    %v1102 = vunpack.c.h.b16 %v555
    %v1103 = vunpack.c.l.b16 %v556
    %v1104 = vunpack.c.l.b16 %v557
    %v1105 = vunpack.c.h.b16 %v557
    %v1106 = vunpack.c.l.b16 %v558
    %v1107 = vunpack.c.h.b16 %v558
    %v1108 = vunpack.c.l.b16 %v559
    %v1109 = vunpack.c.l.b16 %v560
    %v1110 = vunpack.c.h.b16 %v560
    %v1111 = vunpack.c.l.b16 %v561
    %v1112 = vunpack.c.h.b16 %v561
    %v1113 = vunpack.c.l.b16 %v562
    %v1114 = vunpack.c.l.b16 %v563
    %v1115 = vunpack.c.h.b16 %v563
    %v1116 = vunpack.c.l.b16 %v564
    %v1117 = vunpack.c.h.b16 %v564
    %v1118 = vunpack.c.l.b16 %v565
    %v1119 = vunpack.c.l.b16 %v566
    %v1120 = vunpack.c.h.b16 %v566
    %v1121 = vunpack.c.l.b16 %v567
    %v1122 = vunpack.c.h.b16 %v567
    %v1123 = vunpack.c.l.b16 %v568
    %v1124 = vunpack.c.l.b16 %v569
    %v1125 = vunpack.c.h.b16 %v569
    %v1126 = vunpack.c.l.b16 %v570
    %v1127 = vunpack.c.h.b16 %v570
    %v1128 = vunpack.c.l.b16 %v571
    %v1129 = vunpack.c.l.b16 %v572
    %v1130 = vunpack.c.h.b16 %v572
    %v1131 = vunpack.c.l.b16 %v573
    %v1132 = vunpack.c.h.b16 %v573
    %v1133 = vunpack.c.l.b16 %v574
    %v1134 = vunpack.c.l.b16 %v575
    %v1135 = vunpack.c.h.b16 %v575
    %v1136 = vunpack.c.l.b16 %v576
    %v1137 = vunpack.c.h.b16 %v576
    %v1138 = vunpack.c.l.b16 %v577
    %v1139 = vunpack.c.l.b16 %v578
    %v1140 = vunpack.c.h.b16 %v578
    %v1141 = vunpack.c.l.b16 %v579
    %v1142 = vunpack.c.h.b16 %v579
    %v1143 = vunpack.c.l.b16 %v580
    %v1144 = vunpack.c.l.b16 %v581
    %v1145 = vunpack.c.h.b16 %v581
    %v1146 = vunpack.c.l.b16 %v582
    %v1147 = vunpack.c.h.b16 %v582
    %v1148 = vunpack.c.l.b16 %v583
    %v1149 = vunpack.c.l.b16 %v584
    %v1150 = vunpack.c.h.b16 %v584
    %v1151 = vunpack.c.l.b16 %v585
    %v1152 = vunpack.c.h.b16 %v585
    %v1153 = vunpack.c.l.b16 %v586
    %v1154 = vunpack.c.l.b16 %v587
    %v1155 = vunpack.c.h.b16 %v587
    %v1156 = vunpack.c.l.b16 %v588
    %v1157 = vunpack.c.h.b16 %v588
    %v1158 = vunpack.c.l.b16 %v589
    %v1159 = vunpack.c.l.b16 %v590
    %v1160 = vunpack.c.h.b16 %v590
    %v1161 = vunpack.c.l.b16 %v591
    %v1162 = vunpack.c.h.b16 %v591
    %v1163 = vunpack.c.l.b16 %v592
    %v1164 = vunpack.c.l.b16 %v593
    %v1165 = vunpack.c.h.b16 %v593
    %v1166 = vunpack.c.l.b16 %v594
    %v1167 = vunpack.c.h.b16 %v594
    %v1168 = vunpack.c.l.b16 %v595
    %v1169 = vunpack.c.l.b16 %v596
    %v1170 = vunpack.c.h.b16 %v596
    %v1171 = vunpack.c.l.b16 %v597
    %v1172 = vunpack.c.h.b16 %v597
    %v1173 = vunpack.c.l.b16 %v598
    %v1174 = vunpack.c.l.b16 %v599
    %v1175 = vunpack.c.h.b16 %v599
    %v1176 = vunpack.c.l.b16 %v600
    %v1177 = vunpack.c.h.b16 %v600
    %v1178 = vunpack.c.l.b16 %v601
    %v1179 = vunpack.c.l.b16 %v602
    %v1180 = vunpack.c.h.b16 %v602
    %v1181 = vunpack.c.l.b16 %v603
    %v1182 = vunpack.c.h.b16 %v603
    %v1183 = vunpack.c.l.b16 %v604
    %v1184 = vunpack.c.l.b16 %v605
    %v1185 = vunpack.c.h.b16 %v605
    %v1186 = vunpack.c.l.b16 %v606
    %v1187 = vunpack.c.h.b16 %v606
    %v1188 = vunpack.c.l.b16 %v607
    %v1189 = vunpack.c.l.b16 %v608
    %v1190 = vunpack.c.h.b16 %v608
    %v1191 = vunpack.c.l.b16 %v609
    %v1192 = vunpack.c.h.b16 %v609
    %v1193 = vunpack.c.l.b16 %v610
    %v1194 = vunpack.c.l.b16 %v611
    %v1195 = vunpack.c.h.b16 %v611
    %v1196 = vunpack.c.l.b16 %v612
    %v1197 = vunpack.c.h.b16 %v612
    %v1198 = vunpack.c.l.b16 %v613
    %v1199 = vunpack.c.l.b16 %v614
    %v1200 = vunpack.c.h.b16 %v614
    %v1201 = vunpack.c.l.b16 %v615
    %v1202 = vunpack.c.h.b16 %v615
    %v1203 = vunpack.c.l.b16 %v616
    %v1204 = vunpack.c.l.b16 %v617
    %v1205 = vunpack.c.h.b16 %v617
    %v1206 = vunpack.c.l.b16 %v618
    %v1207 = vunpack.c.h.b16 %v618
    %v1208 = vunpack.c.l.b16 %v619
    %v1209 = vunpack.c.l.b16 %v620
    %v1210 = vunpack.c.h.b16 %v620
    %v1211 = vunpack.c.l.b16 %v621
    %v1212 = vunpack.c.h.b16 %v621
    %v1213 = vunpack.c.l.b16 %v622
    %v1214 = vunpack.c.l.b16 %v623
    %v1215 = vunpack.c.h.b16 %v623
    %v1216 = vunpack.c.l.b16 %v624
    %v1217 = vunpack.c.h.b16 %v624
    %v1218 = vunpack.c.l.b16 %v625
    %v1219 = vunpack.c.l.b16 %v626
    %v1220 = vunpack.c.h.b16 %v626
    %v1221 = vunpack.c.l.b16 %v627
    %v1222 = vunpack.c.h.b16 %v627
    %v1223 = vunpack.c.l.b16 %v628
    %v1224 = vunpack.c.l.b16 %v629
    %v1225 = vunpack.c.h.b16 %v629
    %v1226 = vunpack.c.l.b16 %v630
    %v1227 = vunpack.c.h.b16 %v630
    %v1228 = vunpack.c.l.b16 %v631
    %v1229 = vunpack.c.l.b16 %v632
    %v1230 = vunpack.c.h.b16 %v632
    %v1231 = vunpack.c.l.b16 %v633
    %v1232 = vunpack.c.h.b16 %v633
    %v1233 = vunpack.c.l.b16 %v634
    %v1234 = vunpack.c.l.b16 %v635
    %v1235 = vunpack.c.h.b16 %v635
    %v1236 = vunpack.c.l.b16 %v636
    %v1237 = vunpack.c.h.b16 %v636
    %v1238 = vunpack.c.l.b16 %v637
    %v1239 = vunpack.c.l.b16 %v638
    %v1240 = vunpack.c.h.b16 %v638
    %v1241 = vunpack.c.l.b16 %v639
    %v1242 = vunpack.c.h.b16 %v639
    %v1243 = vunpack.c.l.b16 %v640
    %v1244 = vunpack.c.l.b16 %v641
    %v1245 = vunpack.c.h.b16 %v641
    %v1246 = vunpack.c.l.b16 %v642
    %v1247 = vunpack.c.h.b16 %v642
    %v1248 = vunpack.c.l.b16 %v643
    %v1249 = vunpack.c.l.b16 %v644
    %v1250 = vunpack.c.h.b16 %v644
    %v1251 = vunpack.c.l.b16 %v645
    %v1252 = vunpack.c.h.b16 %v645
    %v1253 = vunpack.c.l.b16 %v646
    %v1254 = vunpack.c.l.b16 %v647
    %v1255 = vunpack.c.h.b16 %v647
    %v1256 = vunpack.c.l.b16 %v648
    %v1257 = vunpack.c.h.b16 %v648
    %v1258 = vunpack.c.l.b16 %v649
    %v1259 = vunpack.c.l.b16 %v650
    %v1260 = vunpack.c.h.b16 %v650
    %v1261 = vunpack.c.l.b16 %v651
    %v1262 = vunpack.c.h.b16 %v651
    %v1263 = vunpack.c.l.b16 %v652
    %v1264 = vunpack.c.l.b16 %v653
    %v1265 = vunpack.c.h.b16 %v653
    %v1266 = vunpack.c.l.b16 %v654
    %v1267 = vunpack.c.h.b16 %v654
    %v1268 = vunpack.c.l.b16 %v655
    %v1269 = vunpack.c.l.b16 %v656
    %v1270 = vunpack.c.h.b16 %v656
    %v1271 = vunpack.c.l.b16 %v657
    %v1272 = vunpack.c.h.b16 %v657
    %v1273 = vunpack.c.l.b16 %v658
    %v1274 = vunpack.c.l.b16 %v659
    %v1275 = vunpack.c.h.b16 %v659
    %v1276 = vunpack.c.l.b16 %v660
    %v1277 = vunpack.c.h.b16 %v660
    %v1278 = vunpack.c.l.b16 %v661
    %v1279 = vunpack.c.l.b16 %v662
    %v1280 = vunpack.c.h.b16 %v662
    %v1281 = vunpack.c.l.b16 %v663
    %v1282 = vunpack.c.h.b16 %v663
    %v1283 = vunpack.c.l.b16 %v664
    %v1284 = vunpack.c.l.b16 %v665
    %v1285 = vunpack.c.h.b16 %v665
    %v1286 = vunpack.c.l.b16 %v666
    %v1287 = vunpack.c.h.b16 %v666
    %v1288 = vunpack.c.l.b16 %v667
    %v1289 = vunpack.c.l.b16 %v668
    %v1290 = vunpack.c.h.b16 %v668
    %v1291 = vunpack.c.l.b16 %v669
    %v1292 = vunpack.c.h.b16 %v669
    %v1293 = vunpack.c.l.b16 %v670
    %v1294 = vunpack.c.l.b16 %v671
    %v1295 = vunpack.c.h.b16 %v671
    %v1296 = vunpack.c.l.b16 %v672
    %v1297 = vunpack.c.h.b16 %v672
    %v1298 = vunpack.c.l.b16 %v673
    %v1299 = vunpack.c.l.b16 %v674
    %v1300 = vunpack.c.h.b16 %v674
    %v1301 = vunpack.c.l.b16 %v675
    %v1302 = vunpack.c.h.b16 %v675
    %v1303 = vunpack.c.l.b16 %v676
    %v1304 = vunpack.c.l.b16 %v677
    %v1305 = vunpack.c.h.b16 %v677
    %v1306 = vunpack.c.l.b16 %v678
    %v1307 = vunpack.c.h.b16 %v678
    %v1308 = vunpack.c.l.b16 %v679
    %v1309 = vunpack.c.l.b16 %v680
    %v1310 = vunpack.c.h.b16 %v680
    %v1311 = vunpack.c.l.b16 %v681
    %v1312 = vunpack.c.h.b16 %v681
    %v1313 = vunpack.c.l.b16 %v682
    %v1314 = vunpack.c.l.b16 %v683
    %v1315 = vunpack.c.h.b16 %v683
    %v1316 = vunpack.c.l.b16 %v684
    %v1317 = vunpack.c.h.b16 %v684
    %v1318 = vunpack.c.l.b16 %v685
    %v1319 = vunpack.c.l.b16 %v686
    %v1320 = vunpack.c.h.b16 %v686
    %v1321 = vunpack.c.l.b16 %v687
    %v1322 = vunpack.c.h.b16 %v687
    %v1323 = vunpack.c.l.b16 %v688
    %v1324 = vunpack.c.l.b16 %v689
    %v1325 = vunpack.c.h.b16 %v689
    %v1326 = vunpack.c.l.b16 %v690
    %v1327 = vunpack.c.h.b16 %v690
    %v1328 = vunpack.c.l.b16 %v691
    %v1329 = vunpack.c.l.b16 %v692
    %v1330 = vunpack.c.h.b16 %v692
    %v1331 = vunpack.c.l.b16 %v693
    %v1332 = vunpack.c.h.b16 %v693
    %v1333 = vunpack.c.l.b16 %v694
    %v1334 = vunpack.c.l.b16 %v695
    %v1335 = vunpack.c.h.b16 %v695
    %v1336 = vunpack.c.l.b16 %v696
    %v1337 = vunpack.c.h.b16 %v696
    %v1338 = vunpack.c.l.b16 %v697
    %v1339 = vunpack.c.l.b16 %v698
    %v1340 = vunpack.c.h.b16 %v698
    %v1341 = vunpack.c.l.b16 %v699
    %v1342 = vunpack.c.h.b16 %v699
    %v1343 = vunpack.c.l.b16 %v700
    %v1344 = vunpack.c.l.b16 %v701
    %v1345 = vunpack.c.h.b16 %v701
    %v1346 = vunpack.c.l.b16 %v702
    %v1347 = vunpack.c.h.b16 %v702
    %v1348 = vunpack.c.l.b16 %v703
    %v1349 = vunpack.c.l.b16 %v704
    %v1350 = vunpack.c.h.b16 %v704
    %v1351 = vunpack.c.l.b16 %v705
    %v1352 = vunpack.c.h.b16 %v705
    %v1353 = vunpack.c.l.b16 %v706
    %v1354 = vunpack.c.l.b16 %v707
    %v1355 = vunpack.c.h.b16 %v707
    %v1356 = vunpack.c.l.b16 %v708
    %v1357 = vunpack.c.h.b16 %v708
    %v1358 = vunpack.c.l.b16 %v709
    %v1359 = vunpack.c.l.b16 %v710
    %v1360 = vunpack.c.h.b16 %v710
    %v1361 = vunpack.c.l.b16 %v711
    %v1362 = vunpack.c.h.b16 %v711
    %v1363 = vunpack.c.l.b16 %v712
    %v1364 = vunpack.c.l.b16 %v713
    %v1365 = vunpack.c.h.b16 %v713
    %v1366 = vunpack.c.l.b16 %v714
    %v1367 = vunpack.c.h.b16 %v714
    %v1368 = vunpack.c.l.b16 %v715
    %v1369 = vunpack.c.l.b16 %v716
    %v1370 = vunpack.c.h.b16 %v716
    %v1371 = vunpack.c.l.b16 %v717
    %v1372 = vunpack.c.h.b16 %v717
    %v1373 = vunpack.c.l.b16 %v718
    %v1374 = vunpack.c.l.b16 %v719
    %v1375 = vunpack.c.h.b16 %v719
    %v1376 = vunpack.c.l.b16 %v720
    %v1377 = vunpack.c.h.b16 %v720
    %v1378 = vunpack.c.l.b16 %v721
    %v1379 = vunpack.c.l.b16 %v722
    %v1380 = vunpack.c.h.b16 %v722
    %v1381 = vunpack.c.l.b16 %v723
    %v1382 = vunpack.c.h.b16 %v723
    %v1383 = vunpack.c.l.b16 %v724
    %v1384 = vunpack.c.l.b16 %v725
    %v1385 = vunpack.c.h.b16 %v725
    %v1386 = vunpack.c.l.b16 %v726
    %v1387 = vunpack.c.h.b16 %v726
    %v1388 = vunpack.c.l.b16 %v727
    %v1389 = vunpack.c.l.b16 %v728
    %v1390 = vunpack.c.h.b16 %v728
    %v1391 = vunpack.c.l.b16 %v729
    %v1392 = vunpack.c.h.b16 %v729
    %v1393 = vunpack.c.l.b16 %v730
    %v1394 = vunpack.c.l.b16 %v731
    %v1395 = vunpack.c.h.b16 %v731
    %v1396 = vunpack.c.l.b16 %v732
    %v1397 = vunpack.c.h.b16 %v732
    %v1398 = vunpack.c.l.b16 %v733
    %v1399 = vunpack.c.l.b16 %v734
    %v1400 = vunpack.c.h.b16 %v734
    %v1401 = vunpack.c.l.b16 %v735
    %v1402 = vunpack.c.h.b16 %v735
    %v1403 = vunpack.c.l.b16 %v736
    %v1404 = vpack.c.b16 %v1009, %v1004
    %v1405 = vpack.c.b16 %v1010, %v1005
    %v1406 = vpack.c.b16 %v1011, %v1006
    %v1407 = vpack.c.b16 %v1012, %v1007
    %v1408 = vpack.c.b16 %v1013, %v1008
    %v1409 = vpack.c.b16 %v1019, %v1014
    %v1410 = vpack.c.b16 %v1020, %v1015
    %v1411 = vpack.c.b16 %v1021, %v1016
    %v1412 = vpack.c.b16 %v1022, %v1017
    %v1413 = vpack.c.b16 %v1023, %v1018
    %v1414 = vpack.c.b16 %v1029, %v1024
    %v1415 = vpack.c.b16 %v1030, %v1025
    %v1416 = vpack.c.b16 %v1031, %v1026
    %v1417 = vpack.c.b16 %v1032, %v1027
    %v1418 = vpack.c.b16 %v1033, %v1028
    %v1419 = vpack.c.b16 %v1039, %v1034
    %v1420 = vpack.c.b16 %v1040, %v1035
    %v1421 = vpack.c.b16 %v1041, %v1036
    %v1422 = vpack.c.b16 %v1042, %v1037
    %v1423 = vpack.c.b16 %v1043, %v1038
    %v1424 = vpack.c.b16 %v1049, %v1044
    %v1425 = vpack.c.b16 %v1050, %v1045
    %v1426 = vpack.c.b16 %v1051, %v1046
    %v1427 = vpack.c.b16 %v1052, %v1047
    %v1428 = vpack.c.b16 %v1053, %v1048
    %v1429 = vpack.c.b16 %v1059, %v1054
    %v1430 = vpack.c.b16 %v1060, %v1055
    %v1431 = vpack.c.b16 %v1061, %v1056
    %v1432 = vpack.c.b16 %v1062, %v1057
    %v1433 = vpack.c.b16 %v1063, %v1058
    %v1434 = vpack.c.b16 %v1069, %v1064
    %v1435 = vpack.c.b16 %v1070, %v1065
    %v1436 = vpack.c.b16 %v1071, %v1066
    %v1437 = vpack.c.b16 %v1072, %v1067
    %v1438 = vpack.c.b16 %v1073, %v1068
    %v1439 = vpack.c.b16 %v1079, %v1074
    %v1440 = vpack.c.b16 %v1080, %v1075
    %v1441 = vpack.c.b16 %v1081, %v1076
    %v1442 = vpack.c.b16 %v1082, %v1077
    %v1443 = vpack.c.b16 %v1083, %v1078
    %v1444 = vpack.c.b16 %v1089, %v1084
    %v1445 = vpack.c.b16 %v1090, %v1085
    %v1446 = vpack.c.b16 %v1091, %v1086
    %v1447 = vpack.c.b16 %v1092, %v1087
    %v1448 = vpack.c.b16 %v1093, %v1088
    %v1449 = vpack.c.b16 %v1099, %v1094
    %v1450 = vpack.c.b16 %v1100, %v1095
    %v1451 = vpack.c.b16 %v1101, %v1096
    %v1452 = vpack.c.b16 %v1102, %v1097
    %v1453 = vpack.c.b16 %v1103, %v1098
    %v1454 = vpack.c.b16 %v1109, %v1104
    %v1455 = vpack.c.b16 %v1110, %v1105
    %v1456 = vpack.c.b16 %v1111, %v1106
    %v1457 = vpack.c.b16 %v1112, %v1107
    %v1458 = vpack.c.b16 %v1113, %v1108
    %v1459 = vpack.c.b16 %v1119, %v1114
    %v1460 = vpack.c.b16 %v1120, %v1115
    %v1461 = vpack.c.b16 %v1121, %v1116
    %v1462 = vpack.c.b16 %v1122, %v1117
    %v1463 = vpack.c.b16 %v1123, %v1118
    %v1464 = vpack.c.b16 %v1129, %v1124
    %v1465 = vpack.c.b16 %v1130, %v1125
    %v1466 = vpack.c.b16 %v1131, %v1126
    %v1467 = vpack.c.b16 %v1132, %v1127
    %v1468 = vpack.c.b16 %v1133, %v1128
    %v1469 = vpack.c.b16 %v1139, %v1134
    %v1470 = vpack.c.b16 %v1140, %v1135
    %v1471 = vpack.c.b16 %v1141, %v1136
    %v1472 = vpack.c.b16 %v1142, %v1137
    %v1473 = vpack.c.b16 %v1143, %v1138
    %v1474 = vpack.c.b16 %v1149, %v1144
    %v1475 = vpack.c.b16 %v1150, %v1145
    %v1476 = vpack.c.b16 %v1151, %v1146
    %v1477 = vpack.c.b16 %v1152, %v1147
    %v1478 = vpack.c.b16 %v1153, %v1148
    %v1479 = vpack.c.b16 %v1159, %v1154
    %v1480 = vpack.c.b16 %v1160, %v1155
    %v1481 = vpack.c.b16 %v1161, %v1156
    %v1482 = vpack.c.b16 %v1162, %v1157
    %v1483 = vpack.c.b16 %v1163, %v1158
    %v1484 = vpack.c.b16 %v1169, %v1164
    %v1485 = vpack.c.b16 %v1170, %v1165
    %v1486 = vpack.c.b16 %v1171, %v1166
    %v1487 = vpack.c.b16 %v1172, %v1167
    %v1488 = vpack.c.b16 %v1173, %v1168
    %v1489 = vpack.c.b16 %v1179, %v1174
    %v1490 = vpack.c.b16 %v1180, %v1175
    %v1491 = vpack.c.b16 %v1181, %v1176
    %v1492 = vpack.c.b16 %v1182, %v1177
    %v1493 = vpack.c.b16 %v1183, %v1178
    %v1494 = vpack.c.b16 %v1189, %v1184
    %v1495 = vpack.c.b16 %v1190, %v1185
    %v1496 = vpack.c.b16 %v1191, %v1186
    %v1497 = vpack.c.b16 %v1192, %v1187
    %v1498 = vpack.c.b16 %v1193, %v1188
    %v1499 = vpack.c.b16 %v1199, %v1194
    %v1500 = vpack.c.b16 %v1200, %v1195
    %v1501 = vpack.c.b16 %v1201, %v1196
    %v1502 = vpack.c.b16 %v1202, %v1197
    %v1503 = vpack.c.b16 %v1203, %v1198
    %v1504 = vpack.c.b16 %v1209, %v1204
    %v1505 = vpack.c.b16 %v1210, %v1205
    %v1506 = vpack.c.b16 %v1211, %v1206
    %v1507 = vpack.c.b16 %v1212, %v1207
    %v1508 = vpack.c.b16 %v1213, %v1208
    %v1509 = vpack.c.b16 %v1219, %v1214
    %v1510 = vpack.c.b16 %v1220, %v1215
    %v1511 = vpack.c.b16 %v1221, %v1216
    %v1512 = vpack.c.b16 %v1222, %v1217
    %v1513 = vpack.c.b16 %v1223, %v1218
    %v1514 = vpack.c.b16 %v1229, %v1224
    %v1515 = vpack.c.b16 %v1230, %v1225
    %v1516 = vpack.c.b16 %v1231, %v1226
    %v1517 = vpack.c.b16 %v1232, %v1227
    %v1518 = vpack.c.b16 %v1233, %v1228
    %v1519 = vpack.c.b16 %v1239, %v1234
    %v1520 = vpack.c.b16 %v1240, %v1235
    %v1521 = vpack.c.b16 %v1241, %v1236
    %v1522 = vpack.c.b16 %v1242, %v1237
    %v1523 = vpack.c.b16 %v1243, %v1238
    %v1524 = vpack.c.b16 %v1249, %v1244
    %v1525 = vpack.c.b16 %v1250, %v1245
    %v1526 = vpack.c.b16 %v1251, %v1246
    %v1527 = vpack.c.b16 %v1252, %v1247
    %v1528 = vpack.c.b16 %v1253, %v1248
    %v1529 = vpack.c.b16 %v1259, %v1254
    %v1530 = vpack.c.b16 %v1260, %v1255
    %v1531 = vpack.c.b16 %v1261, %v1256
    %v1532 = vpack.c.b16 %v1262, %v1257
    %v1533 = vpack.c.b16 %v1263, %v1258
    %v1534 = vpack.c.b16 %v1269, %v1264
    %v1535 = vpack.c.b16 %v1270, %v1265
    %v1536 = vpack.c.b16 %v1271, %v1266
    %v1537 = vpack.c.b16 %v1272, %v1267
    %v1538 = vpack.c.b16 %v1273, %v1268
    %v1539 = vpack.c.b16 %v1279, %v1274
    %v1540 = vpack.c.b16 %v1280, %v1275
    %v1541 = vpack.c.b16 %v1281, %v1276
    %v1542 = vpack.c.b16 %v1282, %v1277
    %v1543 = vpack.c.b16 %v1283, %v1278
    %v1544 = vpack.c.b16 %v1289, %v1284
    %v1545 = vpack.c.b16 %v1290, %v1285
    %v1546 = vpack.c.b16 %v1291, %v1286
    %v1547 = vpack.c.b16 %v1292, %v1287
    %v1548 = vpack.c.b16 %v1293, %v1288
    %v1549 = vpack.c.b16 %v1299, %v1294
    %v1550 = vpack.c.b16 %v1300, %v1295
    %v1551 = vpack.c.b16 %v1301, %v1296
    %v1552 = vpack.c.b16 %v1302, %v1297
    %v1553 = vpack.c.b16 %v1303, %v1298
    %v1554 = vpack.c.b16 %v1309, %v1304
    %v1555 = vpack.c.b16 %v1310, %v1305
    %v1556 = vpack.c.b16 %v1311, %v1306
    %v1557 = vpack.c.b16 %v1312, %v1307
    %v1558 = vpack.c.b16 %v1313, %v1308
    %v1559 = vpack.c.b16 %v1319, %v1314
    %v1560 = vpack.c.b16 %v1320, %v1315
    %v1561 = vpack.c.b16 %v1321, %v1316
    %v1562 = vpack.c.b16 %v1322, %v1317
    %v1563 = vpack.c.b16 %v1323, %v1318
    %v1564 = vpack.c.b16 %v1329, %v1324
    %v1565 = vpack.c.b16 %v1330, %v1325
    %v1566 = vpack.c.b16 %v1331, %v1326
    %v1567 = vpack.c.b16 %v1332, %v1327
    %v1568 = vpack.c.b16 %v1333, %v1328
    %v1569 = vpack.c.b16 %v1339, %v1334
    %v1570 = vpack.c.b16 %v1340, %v1335
    %v1571 = vpack.c.b16 %v1341, %v1336
    %v1572 = vpack.c.b16 %v1342, %v1337
    %v1573 = vpack.c.b16 %v1343, %v1338
    %v1574 = vpack.c.b16 %v1349, %v1344
    %v1575 = vpack.c.b16 %v1350, %v1345
    %v1576 = vpack.c.b16 %v1351, %v1346
    %v1577 = vpack.c.b16 %v1352, %v1347
    %v1578 = vpack.c.b16 %v1353, %v1348
    %v1579 = vpack.c.b16 %v1359, %v1354
    %v1580 = vpack.c.b16 %v1360, %v1355
    %v1581 = vpack.c.b16 %v1361, %v1356
    %v1582 = vpack.c.b16 %v1362, %v1357
    %v1583 = vpack.c.b16 %v1363, %v1358
    %v1584 = vpack.c.b16 %v1369, %v1364
    %v1585 = vpack.c.b16 %v1370, %v1365
    %v1586 = vpack.c.b16 %v1371, %v1366
    %v1587 = vpack.c.b16 %v1372, %v1367
    %v1588 = vpack.c.b16 %v1373, %v1368
    %v1589 = vpack.c.b16 %v1379, %v1374
    %v1590 = vpack.c.b16 %v1380, %v1375
    %v1591 = vpack.c.b16 %v1381, %v1376
    %v1592 = vpack.c.b16 %v1382, %v1377
    %v1593 = vpack.c.b16 %v1383, %v1378
    %v1594 = vpack.c.b16 %v1389, %v1384
    %v1595 = vpack.c.b16 %v1390, %v1385
    %v1596 = vpack.c.b16 %v1391, %v1386
    %v1597 = vpack.c.b16 %v1392, %v1387
    %v1598 = vpack.c.b16 %v1393, %v1388
    %v1599 = vpack.c.b16 %v1399, %v1394
    %v1600 = vpack.c.b16 %v1400, %v1395
    %v1601 = vpack.c.b16 %v1401, %v1396
    %v1602 = vpack.c.b16 %v1402, %v1397
    %v1603 = vpack.c.b16 %v1403, %v1398
    %1804 = vmatprep.subr.bf16.mxu0 %v1405
    %1805 = vmatpush1.bf16.msra.mxu0 %v1404
    %1806 = vmatprep.subr.bf16.mxu0 %v1410
    %1807 = vmatpush1.bf16.msra.mxu0 %v1409
    %1808 = vmatprep.subr.bf16.mxu0 %v1415
    %1809 = vmatpush1.bf16.msra.mxu0 %v1414
    %1810 = vmatprep.subr.bf16.mxu0 %v1420
    %1811 = vmatpush1.bf16.msra.mxu0 %v1419
    %1812 = vmatprep.subr.bf16.mxu0 %v1425
    %1813 = vmatpush1.bf16.msra.mxu0 %v1424
    %1814 = vmatprep.subr.bf16.mxu0 %v1430
    %1815 = vmatpush1.bf16.msra.mxu0 %v1429
    %1816 = vmatprep.subr.bf16.mxu0 %v1435
    %1817 = vmatpush1.bf16.msra.mxu0 %v1434
    %1818 = vmatprep.subr.bf16.mxu0 %v1440
    %1819 = vmatpush1.bf16.msra.mxu0 %v1439
    %1820 = vmatprep.subr.bf16.mxu0 %v1445
    %1821 = vmatpush1.bf16.msra.mxu0 %v1444
    %1822 = vmatprep.subr.bf16.mxu0 %v1450
    %1823 = vmatpush1.bf16.msra.mxu0 %v1449
    %1824 = vmatprep.subr.bf16.mxu0 %v1455
    %1825 = vmatpush1.bf16.msra.mxu0 %v1454
    %1826 = vmatprep.subr.bf16.mxu0 %v1460
    %1827 = vmatpush1.bf16.msra.mxu0 %v1459
    %1828 = vmatprep.subr.bf16.mxu0 %v1465
    %1829 = vmatpush1.bf16.msra.mxu0 %v1464
    %1830 = vmatprep.subr.bf16.mxu0 %v1470
    %1831 = vmatpush1.bf16.msra.mxu0 %v1469
    %1832 = vmatprep.subr.bf16.mxu0 %v1475
    %1833 = vmatpush1.bf16.msra.mxu0 %v1474
    %1834 = vmatprep.subr.bf16.mxu0 %v1480
    %1835 = vmatpush1.bf16.msra.mxu0 %v1479
    %1836 = vmatprep.mubr.bf16.mxu0 %v493
    %1837 = vmatmul.mubr.bf16.gmra.mrb[0].mxu0 %v492
    %v1838 = vpop.f32.mrb[0].mxu0
    %v1839 = vadd.f32 %v742, %v1838
    %v1840 = vpop.f32.mrb[0].mxu0
    %v1841 = vadd.f32 %v746, %v1840
    %v1842 = vpop.f32.mrb[0].mxu0
    %v1843 = vpop.f32.mrb[0].mxu0
    %1844 = vdwg.mxu0
    %1845 = vmatprep.subr.bf16.mxu0 %v1485
    %1846 = vmatpush1.bf16.msra.mxu0 %v1484
    %1847 = vmatprep.subr.bf16.mxu0 %v1490
    %1848 = vmatpush1.bf16.msra.mxu0 %v1489
    %1849 = vmatprep.subr.bf16.mxu0 %v1495
    %1850 = vmatpush1.bf16.msra.mxu0 %v1494
    %1851 = vmatprep.subr.bf16.mxu0 %v1500
    %1852 = vmatpush1.bf16.msra.mxu0 %v1499
    %1853 = vmatprep.subr.bf16.mxu0 %v1505
    %1854 = vmatpush1.bf16.msra.mxu0 %v1504
    %1855 = vmatprep.subr.bf16.mxu0 %v1510
    %1856 = vmatpush1.bf16.msra.mxu0 %v1509
    %1857 = vmatprep.subr.bf16.mxu0 %v1515
    %1858 = vmatpush1.bf16.msra.mxu0 %v1514
    %1859 = vmatprep.subr.bf16.mxu0 %v1520
    %1860 = vmatpush1.bf16.msra.mxu0 %v1519
    %1861 = vmatprep.subr.bf16.mxu0 %v1525
    %1862 = vmatpush1.bf16.msra.mxu0 %v1524
    %1863 = vmatprep.subr.bf16.mxu0 %v1530
    %1864 = vmatpush1.bf16.msra.mxu0 %v1529
    %1865 = vmatprep.subr.bf16.mxu0 %v1535
    %1866 = vmatpush1.bf16.msra.mxu0 %v1534
    %1867 = vmatprep.subr.bf16.mxu0 %v1540
    %1868 = vmatpush1.bf16.msra.mxu0 %v1539
    %1869 = vmatprep.subr.bf16.mxu0 %v1545
    %1870 = vmatpush1.bf16.msra.mxu0 %v1544
    %1871 = vmatprep.subr.bf16.mxu0 %v1550
    %1872 = vmatpush1.bf16.msra.mxu0 %v1549
    %1873 = vmatprep.subr.bf16.mxu0 %v1555
    %1874 = vmatpush1.bf16.msra.mxu0 %v1554
    %1875 = vmatprep.subr.bf16.mxu0 %v1560
    %1876 = vmatpush1.bf16.msra.mxu0 %v1559
    %1877 = vmatprep.mubr.bf16.mxu0 %v495
    %1878 = vmatmul.mubr.bf16.gmra.mrb[0].mxu0 %v494
    %v1879 = vpop.f32.mrb[0].mxu0
    %v1880 = vadd.f32 %v1839, %v1879
    %v1881 = vpop.f32.mrb[0].mxu0
    %v1882 = vadd.f32 %v1841, %v1881
    %v1883 = vpop.f32.mrb[0].mxu0
    %v1884 = vpop.f32.mrb[0].mxu0
    %1885 = vdwg.mxu0
    %1886 = vmatprep.subr.bf16.mxu0 %v1565
    %1887 = vmatpush1.bf16.msra.mxu0 %v1564
    %1888 = vmatprep.subr.bf16.mxu0 %v1570
    %1889 = vmatpush1.bf16.msra.mxu0 %v1569
    %1890 = vmatprep.subr.bf16.mxu0 %v1575
    %1891 = vmatpush1.bf16.msra.mxu0 %v1574
    %1892 = vmatprep.subr.bf16.mxu0 %v1580
    %1893 = vmatpush1.bf16.msra.mxu0 %v1579
    %1894 = vmatprep.subr.bf16.mxu0 %v1585
    %1895 = vmatpush1.bf16.msra.mxu0 %v1584
    %1896 = vmatprep.subr.bf16.mxu0 %v1590
    %1897 = vmatpush1.bf16.msra.mxu0 %v1589
    %1898 = vmatprep.subr.bf16.mxu0 %v1595
    %1899 = vmatpush1.bf16.msra.mxu0 %v1594
    %1900 = vmatprep.subr.bf16.mxu0 %v1600
    %1901 = vmatpush1.bf16.msra.mxu0 %v1599
    %1902 = vmatprep.subr.bf16.mxu0 0
    %1903 = vmatpush1.bf16.msra.mxu0 0
    %1904 = vmatprep.subr.bf16.mxu0 0
    %1905 = vmatpush1.bf16.msra.mxu0 0
    %1906 = vmatprep.subr.bf16.mxu0 0
    %1907 = vmatpush1.bf16.msra.mxu0 0
    %1908 = vmatprep.subr.bf16.mxu0 0
    %1909 = vmatpush1.bf16.msra.mxu0 0
    %1910 = vmatprep.subr.bf16.mxu0 0
    %1911 = vmatpush1.bf16.msra.mxu0 0
    %1912 = vmatprep.subr.bf16.mxu0 0
    %1913 = vmatpush1.bf16.msra.mxu0 0
    %1914 = vmatprep.subr.bf16.mxu0 0
    %1915 = vmatpush1.bf16.msra.mxu0 0
    %1916 = vmatprep.subr.bf16.mxu0 0
    %1917 = vmatpush1.bf16.msra.mxu0 0
    %1918 = vmatprep.mubr.bf16.mxu0 0
    %1919 = vmatmul.mubr.bf16.gmra.mrb[0].mxu0 %v496
    %v1920 = vpop.f32.mrb[0].mxu0
    %v1921 = vadd.f32 %v1880, %v1920
    %v1922 = vpop.f32.mrb[0].mxu0
    %v1923 = vadd.f32 %v1882, %v1922
    %v1924 = vpop.f32.mrb[0].mxu0
    %v1925 = vpop.f32.mrb[0].mxu0
    %1926 = vdwg.mxu0
    %1927 = vmatprep.subr.bf16.mxu0 %v1407
    %1928 = vmatpush1.bf16.msra.mxu0 %v1406
    %1929 = vmatprep.subr.bf16.mxu0 %v1412
    %1930 = vmatpush1.bf16.msra.mxu0 %v1411
    %1931 = vmatprep.subr.bf16.mxu0 %v1417
    %1932 = vmatpush1.bf16.msra.mxu0 %v1416
    %1933 = vmatprep.subr.bf16.mxu0 %v1422
    %1934 = vmatpush1.bf16.msra.mxu0 %v1421
    %1935 = vmatprep.subr.bf16.mxu0 %v1427
    %1936 = vmatpush1.bf16.msra.mxu0 %v1426
    %1937 = vmatprep.subr.bf16.mxu0 %v1432
    %1938 = vmatpush1.bf16.msra.mxu0 %v1431
    %1939 = vmatprep.subr.bf16.mxu0 %v1437
    %1940 = vmatpush1.bf16.msra.mxu0 %v1436
    %1941 = vmatprep.subr.bf16.mxu0 %v1442
    %1942 = vmatpush1.bf16.msra.mxu0 %v1441
    %1943 = vmatprep.subr.bf16.mxu0 %v1447
    %1944 = vmatpush1.bf16.msra.mxu0 %v1446
    %1945 = vmatprep.subr.bf16.mxu0 %v1452
    %1946 = vmatpush1.bf16.msra.mxu0 %v1451
    %1947 = vmatprep.subr.bf16.mxu0 %v1457
    %1948 = vmatpush1.bf16.msra.mxu0 %v1456
    %1949 = vmatprep.subr.bf16.mxu0 %v1462
    %1950 = vmatpush1.bf16.msra.mxu0 %v1461
    %1951 = vmatprep.subr.bf16.mxu0 %v1467
    %1952 = vmatpush1.bf16.msra.mxu0 %v1466
    %1953 = vmatprep.subr.bf16.mxu0 %v1472
    %1954 = vmatpush1.bf16.msra.mxu0 %v1471
    %1955 = vmatprep.subr.bf16.mxu0 %v1477
    %1956 = vmatpush1.bf16.msra.mxu0 %v1476
    %1957 = vmatprep.subr.bf16.mxu0 %v1482
    %1958 = vmatpush1.bf16.msra.mxu0 %v1481
    %1959 = vmatprep.mubr.bf16.mxu0 %v493
    %1960 = vmatmul.mubr.bf16.gmra.mrb[0].mxu0 %v492
    %v1961 = vpop.f32.mrb[0].mxu0
    %v1962 = vadd.f32 %v750, %v1961
    %v1963 = vpop.f32.mrb[0].mxu0
    %v1964 = vadd.f32 %v754, %v1963
    %v1965 = vpop.f32.mrb[0].mxu0
    %v1966 = vpop.f32.mrb[0].mxu0
    %1967 = vdwg.mxu0
    %1968 = vmatprep.subr.bf16.mxu0 %v1487
    %1969 = vmatpush1.bf16.msra.mxu0 %v1486
    %1970 = vmatprep.subr.bf16.mxu0 %v1492
    %1971 = vmatpush1.bf16.msra.mxu0 %v1491
    %1972 = vmatprep.subr.bf16.mxu0 %v1497
    %1973 = vmatpush1.bf16.msra.mxu0 %v1496
    %1974 = vmatprep.subr.bf16.mxu0 %v1502
    %1975 = vmatpush1.bf16.msra.mxu0 %v1501
    %1976 = vmatprep.subr.bf16.mxu0 %v1507
    %1977 = vmatpush1.bf16.msra.mxu0 %v1506
    %1978 = vmatprep.subr.bf16.mxu0 %v1512
    %1979 = vmatpush1.bf16.msra.mxu0 %v1511
    %1980 = vmatprep.subr.bf16.mxu0 %v1517
    %1981 = vmatpush1.bf16.msra.mxu0 %v1516
    %1982 = vmatprep.subr.bf16.mxu0 %v1522
    %1983 = vmatpush1.bf16.msra.mxu0 %v1521
    %1984 = vmatprep.subr.bf16.mxu0 %v1527
    %1985 = vmatpush1.bf16.msra.mxu0 %v1526
    %1986 = vmatprep.subr.bf16.mxu0 %v1532
    %1987 = vmatpush1.bf16.msra.mxu0 %v1531
    %1988 = vmatprep.subr.bf16.mxu0 %v1537
    %1989 = vmatpush1.bf16.msra.mxu0 %v1536
    %1990 = vmatprep.subr.bf16.mxu0 %v1542
    %1991 = vmatpush1.bf16.msra.mxu0 %v1541
    %1992 = vmatprep.subr.bf16.mxu0 %v1547
    %1993 = vmatpush1.bf16.msra.mxu0 %v1546
    %1994 = vmatprep.subr.bf16.mxu0 %v1552
    %1995 = vmatpush1.bf16.msra.mxu0 %v1551
    %1996 = vmatprep.subr.bf16.mxu0 %v1557
    %1997 = vmatpush1.bf16.msra.mxu0 %v1556
    %1998 = vmatprep.subr.bf16.mxu0 %v1562
    %1999 = vmatpush1.bf16.msra.mxu0 %v1561
    %2000 = vmatprep.mubr.bf16.mxu0 %v495
    %2001 = vmatmul.mubr.bf16.gmra.mrb[0].mxu0 %v494
    %v2002 = vpop.f32.mrb[0].mxu0
    %v2003 = vadd.f32 %v1962, %v2002
    %v2004 = vpop.f32.mrb[0].mxu0
    %v2005 = vadd.f32 %v1964, %v2004
    %v2006 = vpop.f32.mrb[0].mxu0
    %v2007 = vpop.f32.mrb[0].mxu0
    %2008 = vdwg.mxu0
    %2009 = vmatprep.subr.bf16.mxu0 %v1567
    %2010 = vmatpush1.bf16.msra.mxu0 %v1566
    %2011 = vmatprep.subr.bf16.mxu0 %v1572
    %2012 = vmatpush1.bf16.msra.mxu0 %v1571
    %2013 = vmatprep.subr.bf16.mxu0 %v1577
    %2014 = vmatpush1.bf16.msra.mxu0 %v1576
    %2015 = vmatprep.subr.bf16.mxu0 %v1582
    %2016 = vmatpush1.bf16.msra.mxu0 %v1581
    %2017 = vmatprep.subr.bf16.mxu0 %v1587
    %2018 = vmatpush1.bf16.msra.mxu0 %v1586
    %2019 = vmatprep.subr.bf16.mxu0 %v1592
    %2020 = vmatpush1.bf16.msra.mxu0 %v1591
    %2021 = vmatprep.subr.bf16.mxu0 %v1597
    %2022 = vmatpush1.bf16.msra.mxu0 %v1596
    %2023 = vmatprep.subr.bf16.mxu0 %v1602
    %2024 = vmatpush1.bf16.msra.mxu0 %v1601
    %2025 = vmatprep.subr.bf16.mxu0 0
    %2026 = vmatpush1.bf16.msra.mxu0 0
    %2027 = vmatprep.subr.bf16.mxu0 0
    %2028 = vmatpush1.bf16.msra.mxu0 0
    %2029 = vmatprep.subr.bf16.mxu0 0
    %2030 = vmatpush1.bf16.msra.mxu0 0
    %2031 = vmatprep.subr.bf16.mxu0 0
    %2032 = vmatpush1.bf16.msra.mxu0 0
    %2033 = vmatprep.subr.bf16.mxu0 0
    %2034 = vmatpush1.bf16.msra.mxu0 0
    %2035 = vmatprep.subr.bf16.mxu0 0
    %2036 = vmatpush1.bf16.msra.mxu0 0
    %2037 = vmatprep.subr.bf16.mxu0 0
    %2038 = vmatpush1.bf16.msra.mxu0 0
    %2039 = vmatprep.subr.bf16.mxu0 0
    %2040 = vmatpush1.bf16.msra.mxu0 0
    %2041 = vmatprep.mubr.bf16.mxu0 0
    %2042 = vmatmul.mubr.bf16.gmra.mrb[0].mxu0 %v496
    %v2043 = vpop.f32.mrb[0].mxu0
    %v2044 = vadd.f32 %v2003, %v2043
    %v2045 = vpop.f32.mrb[0].mxu0
    %v2046 = vadd.f32 %v2005, %v2045
    %v2047 = vpop.f32.mrb[0].mxu0
    %v2048 = vpop.f32.mrb[0].mxu0
    %2049 = vdwg.mxu0
    %2050 = vmatprep.subr.bf16.mxu0 0
    %2051 = vmatpush1.bf16.msra.mxu0 %v1408
    %2052 = vmatprep.subr.bf16.mxu0 0
    %2053 = vmatpush1.bf16.msra.mxu0 %v1413
    %2054 = vmatprep.subr.bf16.mxu0 0
    %2055 = vmatpush1.bf16.msra.mxu0 %v1418
    %2056 = vmatprep.subr.bf16.mxu0 0
    %2057 = vmatpush1.bf16.msra.mxu0 %v1423
    %2058 = vmatprep.subr.bf16.mxu0 0
    %2059 = vmatpush1.bf16.msra.mxu0 %v1428
    %2060 = vmatprep.subr.bf16.mxu0 0
    %2061 = vmatpush1.bf16.msra.mxu0 %v1433
    %2062 = vmatprep.subr.bf16.mxu0 0
    %2063 = vmatpush1.bf16.msra.mxu0 %v1438
    %2064 = vmatprep.subr.bf16.mxu0 0
    %2065 = vmatpush1.bf16.msra.mxu0 %v1443
    %2066 = vmatprep.subr.bf16.mxu0 0
    %2067 = vmatpush1.bf16.msra.mxu0 %v1448
    %2068 = vmatprep.subr.bf16.mxu0 0
    %2069 = vmatpush1.bf16.msra.mxu0 %v1453
    %2070 = vmatprep.subr.bf16.mxu0 0
    %2071 = vmatpush1.bf16.msra.mxu0 %v1458
    %2072 = vmatprep.subr.bf16.mxu0 0
    %2073 = vmatpush1.bf16.msra.mxu0 %v1463
    %2074 = vmatprep.subr.bf16.mxu0 0
    %2075 = vmatpush1.bf16.msra.mxu0 %v1468
    %2076 = vmatprep.subr.bf16.mxu0 0
    %2077 = vmatpush1.bf16.msra.mxu0 %v1473
    %2078 = vmatprep.subr.bf16.mxu0 0
    %2079 = vmatpush1.bf16.msra.mxu0 %v1478
    %2080 = vmatprep.subr.bf16.mxu0 0
    %2081 = vmatpush1.bf16.msra.mxu0 %v1483
    %2082 = vmatprep.mubr.bf16.mxu0 %v493
    %2083 = vmatmul.mubr.bf16.gmra.mrb[0].mxu0 %v492
    %v2084 = vpop.f32.mrb[0].mxu0
    %v2085 = vadd.f32 %v758, %v2084
    %v2086 = vpop.f32.mrb[0].mxu0
    %v2087 = vpop.f32.mrb[0].mxu0
    %v2088 = vpop.f32.mrb[0].mxu0
    %2089 = vdwg.mxu0
    %2090 = vmatprep.subr.bf16.mxu0 0
    %2091 = vmatpush1.bf16.msra.mxu0 %v1488
    %2092 = vmatprep.subr.bf16.mxu0 0
    %2093 = vmatpush1.bf16.msra.mxu0 %v1493
    %2094 = vmatprep.subr.bf16.mxu0 0
    %2095 = vmatpush1.bf16.msra.mxu0 %v1498
    %2096 = vmatprep.subr.bf16.mxu0 0
    %2097 = vmatpush1.bf16.msra.mxu0 %v1503
    %2098 = vmatprep.subr.bf16.mxu0 0
    %2099 = vmatpush1.bf16.msra.mxu0 %v1508
    %2100 = vmatprep.subr.bf16.mxu0 0
    %2101 = vmatpush1.bf16.msra.mxu0 %v1513
    %2102 = vmatprep.subr.bf16.mxu0 0
    %2103 = vmatpush1.bf16.msra.mxu0 %v1518
    %2104 = vmatprep.subr.bf16.mxu0 0
    %2105 = vmatpush1.bf16.msra.mxu0 %v1523
    %2106 = vmatprep.subr.bf16.mxu0 0
    %2107 = vmatpush1.bf16.msra.mxu0 %v1528
    %2108 = vmatprep.subr.bf16.mxu0 0
    %2109 = vmatpush1.bf16.msra.mxu0 %v1533
    %2110 = vmatprep.subr.bf16.mxu0 0
    %2111 = vmatpush1.bf16.msra.mxu0 %v1538
    %2112 = vmatprep.subr.bf16.mxu0 0
    %2113 = vmatpush1.bf16.msra.mxu0 %v1543
    %2114 = vmatprep.subr.bf16.mxu0 0
    %2115 = vmatpush1.bf16.msra.mxu0 %v1548
    %2116 = vmatprep.subr.bf16.mxu0 0
    %2117 = vmatpush1.bf16.msra.mxu0 %v1553
    %2118 = vmatprep.subr.bf16.mxu0 0
    %2119 = vmatpush1.bf16.msra.mxu0 %v1558
    %2120 = vmatprep.subr.bf16.mxu0 0
    %2121 = vmatpush1.bf16.msra.mxu0 %v1563
    %2122 = vmatprep.mubr.bf16.mxu0 %v495
    %2123 = vmatmul.mubr.bf16.gmra.mrb[0].mxu0 %v494
    %v2124 = vpop.f32.mrb[0].mxu0
    %v2125 = vadd.f32 %v2085, %v2124
    %v2126 = vpop.f32.mrb[0].mxu0
    %v2127 = vpop.f32.mrb[0].mxu0
    %v2128 = vpop.f32.mrb[0].mxu0
    %2129 = vdwg.mxu0
    %2130 = vmatprep.subr.bf16.mxu0 0
    %2131 = vmatpush1.bf16.msra.mxu0 %v1568
    %2132 = vmatprep.subr.bf16.mxu0 0
    %2133 = vmatpush1.bf16.msra.mxu0 %v1573
    %2134 = vmatprep.subr.bf16.mxu0 0
    %2135 = vmatpush1.bf16.msra.mxu0 %v1578
    %2136 = vmatprep.subr.bf16.mxu0 0
    %2137 = vmatpush1.bf16.msra.mxu0 %v1583
    %2138 = vmatprep.subr.bf16.mxu0 0
    %2139 = vmatpush1.bf16.msra.mxu0 %v1588
    %2140 = vmatprep.subr.bf16.mxu0 0
    %2141 = vmatpush1.bf16.msra.mxu0 %v1593
    %2142 = vmatprep.subr.bf16.mxu0 0
    %2143 = vmatpush1.bf16.msra.mxu0 %v1598
    %2144 = vmatprep.subr.bf16.mxu0 0
    %2145 = vmatpush1.bf16.msra.mxu0 %v1603
    %2146 = vmatprep.subr.bf16.mxu0 0
    %2147 = vmatpush1.bf16.msra.mxu0 0
    %2148 = vmatprep.subr.bf16.mxu0 0
    %2149 = vmatpush1.bf16.msra.mxu0 0
    %2150 = vmatprep.subr.bf16.mxu0 0
    %2151 = vmatpush1.bf16.msra.mxu0 0
    %2152 = vmatprep.subr.bf16.mxu0 0
    %2153 = vmatpush1.bf16.msra.mxu0 0
    %2154 = vmatprep.subr.bf16.mxu0 0
    %2155 = vmatpush1.bf16.msra.mxu0 0
    %2156 = vmatprep.subr.bf16.mxu0 0
    %2157 = vmatpush1.bf16.msra.mxu0 0
    %2158 = vmatprep.subr.bf16.mxu0 0
    %2159 = vmatpush1.bf16.msra.mxu0 0
    %2160 = vmatprep.subr.bf16.mxu0 0
    %2161 = vmatpush1.bf16.msra.mxu0 0
    %2162 = vmatprep.mubr.bf16.mxu0 0
    %2163 = vmatmul.mubr.bf16.gmra.mrb[0].mxu0 %v496
    %v2164 = vpop.f32.mrb[0].mxu0
    %v2165 = vadd.f32 %v2125, %v2164
    %v2166 = vpop.f32.mrb[0].mxu0
    %v2167 = vpop.f32.mrb[0].mxu0
    %v2168 = vpop.f32.mrb[0].mxu0
    %2169 = vdwg.mxu0
    %v2170 = vmax.f32 %v1921, 0.0
    %v2171 = vmax.f32 %v1923, 0.0
    %v2172 = vmax.f32 %v2044, 0.0
    %v2173 = vmax.f32 %v2046, 0.0
    %v2174 = vmax.f32 %v2165, 0.0
    %v2175 = vpack.c.bf16 %v2170, %v2170
    %v2176 = vpack.c.bf16 %v2171, %v2171
    %v2177 = vpack.c.bf16 %v2172, %v2172
    %v2178 = vpack.c.bf16 %v2173, %v2173
    %v2179 = vpack.c.bf16 %v2174, %v2174
    %v2180 = vld [vmem:[#allocation8] sm:$0xf]
    %v2181 = vld [vmem:[#allocation8 + $0x4] sm:$0xf]
    %v2182 = vld [vmem:[#allocation8 + $0x8] sm:$0xf]
    %v2183 = vld [vmem:[#allocation8 + $0xc] sm:$0xf]
    %v2184 = vld [vmem:[#allocation8 + $0x10] sm:$0xf]
    %v2185 = vld [vmem:[#allocation8 + $0x14] sm:$0xf]
    %v2186 = vld [vmem:[#allocation8 + $0x18] sm:$0xf]
    %v2187 = vld [vmem:[#allocation8 + $0x1c] sm:$0xf]
    %v2188 = vld [vmem:[#allocation8 + $0x20] sm:$0xf]
    %v2189 = vld [vmem:[#allocation8 + $0x24] sm:$0xf]
    %v2190 = vld [vmem:[#allocation8 + $0x28] sm:$0xf]
    %v2191 = vld [vmem:[#allocation8 + $0x2c] sm:$0xf]
    %v2192 = vld [vmem:[#allocation8 + $0x30] sm:$0xf]
    %v2193 = vld [vmem:[#allocation8 + $0x34] sm:$0xf]
    %v2194 = vld [vmem:[#allocation8 + $0x38] sm:$0xf]
    %v2195 = vld [vmem:[#allocation8 + $0x3c] sm:$0xf]
    %v2196 = vld [vmem:[#allocation8 + $0x40] sm:$0xf]
    %v2197 = vld [vmem:[#allocation8 + $0x44] sm:$0xf]
    %v2198 = vld [vmem:[#allocation8 + $0x48] sm:$0xf]
    %v2199 = vld [vmem:[#allocation8 + $0x4c] sm:$0xf]
    %v2200 = vld [vmem:[#allocation8 + $0x50] sm:$0xf]
    %v2201 = vld [vmem:[#allocation8 + $0x54] sm:$0xf]
    %v2202 = vld [vmem:[#allocation8 + $0x58] sm:$0xf]
    %v2203 = vld [vmem:[#allocation8 + $0x5c] sm:$0xf]
    %v2204 = vld [vmem:[#allocation8 + $0x60] sm:$0xf]
    %v2205 = vld [vmem:[#allocation8 + $0x64] sm:$0xf]
    %v2206 = vld [vmem:[#allocation8 + $0x68] sm:$0xf]
    %v2207 = vld [vmem:[#allocation8 + $0x6c] sm:$0xf]
    %v2208 = vld [vmem:[#allocation8 + $0x70] sm:$0xf]
    %v2209 = vld [vmem:[#allocation8 + $0x74] sm:$0xf]
    %v2210 = vld [vmem:[#allocation8 + $0x78] sm:$0xf]
    %v2211 = vld [vmem:[#allocation8 + $0x7c] sm:$0xf]
    %v2212 = vld [vmem:[#allocation8 + $0x80] sm:$0xf]
    %v2213 = vld [vmem:[#allocation8 + $0x84] sm:$0xf]
    %v2214 = vld [vmem:[#allocation8 + $0x88] sm:$0xf]
    %v2215 = vld [vmem:[#allocation8 + $0x8c] sm:$0xf]
    %v2216 = vld [vmem:[#allocation8 + $0x90] sm:$0xf]
    %v2217 = vld [vmem:[#allocation8 + $0x94] sm:$0xf]
    %v2218 = vld [vmem:[#allocation8 + $0x98] sm:$0xf]
    %v2219 = vld [vmem:[#allocation8 + $0x9c] sm:$0xf]
    %v2220 = vld [vmem:[#allocation8 + $0xa0] sm:$0xf]
    %v2221 = vld [vmem:[#allocation8 + $0xa4] sm:$0xf]
    %v2222 = vld [vmem:[#allocation8 + $0xa8] sm:$0xf]
    %v2223 = vld [vmem:[#allocation8 + $0xac] sm:$0xf]
    %v2224 = vld [vmem:[#allocation8 + $0xb0] sm:$0xf]
    %v2225 = vld [vmem:[#allocation8 + $0xb4] sm:$0xf]
    %v2226 = vld [vmem:[#allocation8 + $0xb8] sm:$0xf]
    %v2227 = vld [vmem:[#allocation8 + $0xbc] sm:$0xf]
    %v2228 = vld [vmem:[#allocation8 + $0xc0] sm:$0xf]
    %v2229 = vld [vmem:[#allocation8 + $0xc4] sm:$0xf]
    %v2230 = vld [vmem:[#allocation8 + $0xc8] sm:$0xf]
    %v2231 = vld [vmem:[#allocation8 + $0xcc] sm:$0xf]
    %v2232 = vld [vmem:[#allocation8 + $0xd0] sm:$0xf]
    %v2233 = vld [vmem:[#allocation8 + $0xd4] sm:$0xf]
    %v2234 = vld [vmem:[#allocation8 + $0xd8] sm:$0xf]
    %v2235 = vld [vmem:[#allocation8 + $0xdc] sm:$0xf]
    %v2236 = vld [vmem:[#allocation8 + $0xe0] sm:$0xf]
    %v2237 = vld [vmem:[#allocation8 + $0xe4] sm:$0xf]
    %v2238 = vld [vmem:[#allocation8 + $0xe8] sm:$0xf]
    %v2239 = vld [vmem:[#allocation8 + $0xec] sm:$0xf]
    %v2240 = vld [vmem:[#allocation8 + $0xf0] sm:$0xf]
    %v2241 = vld [vmem:[#allocation8 + $0xf4] sm:$0xf]
    %v2242 = vld [vmem:[#allocation8 + $0xf8] sm:$0xf]
    %v2243 = vld [vmem:[#allocation8 + $0xfc] sm:$0xf]
    %v2244 = vld [vmem:[#allocation8 + $0x100] sm:$0xf]
    %v2245 = vld [vmem:[#allocation8 + $0x104] sm:$0xf]
    %v2246 = vld [vmem:[#allocation8 + $0x108] sm:$0xf]
    %v2247 = vld [vmem:[#allocation8 + $0x10c] sm:$0xf]
    %v2248 = vld [vmem:[#allocation8 + $0x110] sm:$0xf]
    %v2249 = vld [vmem:[#allocation8 + $0x114] sm:$0xf]
    %v2250 = vld [vmem:[#allocation8 + $0x118] sm:$0xf]
    %v2251 = vld [vmem:[#allocation8 + $0x11c] sm:$0xf]
    %v2252 = vld [vmem:[#allocation8 + $0x120] sm:$0xf]
    %v2253 = vld [vmem:[#allocation8 + $0x124] sm:$0xf]
    %v2254 = vld [vmem:[#allocation8 + $0x128] sm:$0xf]
    %v2255 = vld [vmem:[#allocation8 + $0x12c] sm:$0xf]
    %v2256 = vld [vmem:[#allocation8 + $0x130] sm:$0xf]
    %v2257 = vld [vmem:[#allocation8 + $0x134] sm:$0xf]
    %v2258 = vld [vmem:[#allocation8 + $0x138] sm:$0xf]
    %v2259 = vld [vmem:[#allocation8 + $0x13c] sm:$0xf]
    %v2260 = vld [vmem:[%s6] sm:$0x1]
    %v2262 = vlaneseq
    %v2263 = vshrl.u32 %v2262, 7
    %v2264 = vsub.s32 0, %v2263
    %v2265 = vrot.slane %v2260, %v2264
    %v2347 = vunpack.c.l.b16 %v2180
    %v2348 = vunpack.c.l.b16 %v2181
    %v2349 = vunpack.c.l.b16 %v2182
    %v2350 = vunpack.c.l.b16 %v2183
    %v2351 = vunpack.c.l.b16 %v2184
    %v2352 = vunpack.c.l.b16 %v2185
    %v2353 = vunpack.c.l.b16 %v2186
    %v2354 = vunpack.c.l.b16 %v2187
    %v2355 = vunpack.c.l.b16 %v2188
    %v2356 = vunpack.c.l.b16 %v2189
    %v2357 = vunpack.c.l.b16 %v2190
    %v2358 = vunpack.c.l.b16 %v2191
    %v2359 = vunpack.c.l.b16 %v2192
    %v2360 = vunpack.c.l.b16 %v2193
    %v2361 = vunpack.c.l.b16 %v2194
    %v2362 = vunpack.c.l.b16 %v2195
    %v2363 = vunpack.c.l.b16 %v2196
    %v2364 = vunpack.c.l.b16 %v2197
    %v2365 = vunpack.c.l.b16 %v2198
    %v2366 = vunpack.c.l.b16 %v2199
    %v2367 = vunpack.c.l.b16 %v2200
    %v2368 = vunpack.c.l.b16 %v2201
    %v2369 = vunpack.c.l.b16 %v2202
    %v2370 = vunpack.c.l.b16 %v2203
    %v2371 = vunpack.c.l.b16 %v2204
    %v2372 = vunpack.c.l.b16 %v2205
    %v2373 = vunpack.c.l.b16 %v2206
    %v2374 = vunpack.c.l.b16 %v2207
    %v2375 = vunpack.c.l.b16 %v2208
    %v2376 = vunpack.c.l.b16 %v2209
    %v2377 = vunpack.c.l.b16 %v2210
    %v2378 = vunpack.c.l.b16 %v2211
    %v2379 = vunpack.c.l.b16 %v2212
    %v2380 = vunpack.c.l.b16 %v2213
    %v2381 = vunpack.c.l.b16 %v2214
    %v2382 = vunpack.c.l.b16 %v2215
    %v2383 = vunpack.c.l.b16 %v2216
    %v2384 = vunpack.c.l.b16 %v2217
    %v2385 = vunpack.c.l.b16 %v2218
    %v2386 = vunpack.c.l.b16 %v2219
    %v2387 = vunpack.c.l.b16 %v2220
    %v2388 = vunpack.c.l.b16 %v2221
    %v2389 = vunpack.c.l.b16 %v2222
    %v2390 = vunpack.c.l.b16 %v2223
    %v2391 = vunpack.c.l.b16 %v2224
    %v2392 = vunpack.c.l.b16 %v2225
    %v2393 = vunpack.c.l.b16 %v2226
    %v2394 = vunpack.c.l.b16 %v2227
    %v2395 = vunpack.c.l.b16 %v2228
    %v2396 = vunpack.c.l.b16 %v2229
    %v2397 = vunpack.c.l.b16 %v2230
    %v2398 = vunpack.c.l.b16 %v2231
    %v2399 = vunpack.c.l.b16 %v2232
    %v2400 = vunpack.c.l.b16 %v2233
    %v2401 = vunpack.c.l.b16 %v2234
    %v2402 = vunpack.c.l.b16 %v2235
    %v2403 = vunpack.c.l.b16 %v2236
    %v2404 = vunpack.c.l.b16 %v2237
    %v2405 = vunpack.c.l.b16 %v2238
    %v2406 = vunpack.c.l.b16 %v2239
    %v2407 = vunpack.c.l.b16 %v2240
    %v2408 = vunpack.c.l.b16 %v2241
    %v2409 = vunpack.c.l.b16 %v2242
    %v2410 = vunpack.c.l.b16 %v2243
    %v2411 = vunpack.c.l.b16 %v2244
    %v2412 = vunpack.c.l.b16 %v2245
    %v2413 = vunpack.c.l.b16 %v2246
    %v2414 = vunpack.c.l.b16 %v2247
    %v2415 = vunpack.c.l.b16 %v2248
    %v2416 = vunpack.c.l.b16 %v2249
    %v2417 = vunpack.c.l.b16 %v2250
    %v2418 = vunpack.c.l.b16 %v2251
    %v2419 = vunpack.c.l.b16 %v2252
    %v2420 = vunpack.c.l.b16 %v2253
    %v2421 = vunpack.c.l.b16 %v2254
    %v2422 = vunpack.c.l.b16 %v2255
    %v2423 = vunpack.c.l.b16 %v2256
    %v2424 = vunpack.c.l.b16 %v2257
    %v2425 = vunpack.c.l.b16 %v2258
    %v2426 = vunpack.c.l.b16 %v2259
    %v2427 = vpack.c.b16 %v2348, %v2347
    %v2428 = vpack.c.b16 %v2350, %v2349
    %v2429 = vpack.c.b16 %v2352, %v2351
    %v2430 = vpack.c.b16 %v2354, %v2353
    %v2431 = vpack.c.b16 %v2356, %v2355
    %v2432 = vpack.c.b16 %v2358, %v2357
    %v2433 = vpack.c.b16 %v2360, %v2359
    %v2434 = vpack.c.b16 %v2362, %v2361
    %v2435 = vpack.c.b16 %v2364, %v2363
    %v2436 = vpack.c.b16 %v2366, %v2365
    %v2437 = vpack.c.b16 %v2368, %v2367
    %v2438 = vpack.c.b16 %v2370, %v2369
    %v2439 = vpack.c.b16 %v2372, %v2371
    %v2440 = vpack.c.b16 %v2374, %v2373
    %v2441 = vpack.c.b16 %v2376, %v2375
    %v2442 = vpack.c.b16 %v2378, %v2377
    %v2443 = vpack.c.b16 %v2380, %v2379
    %v2444 = vpack.c.b16 %v2382, %v2381
    %v2445 = vpack.c.b16 %v2384, %v2383
    %v2446 = vpack.c.b16 %v2386, %v2385
    %v2447 = vpack.c.b16 %v2388, %v2387
    %v2448 = vpack.c.b16 %v2390, %v2389
    %v2449 = vpack.c.b16 %v2392, %v2391
    %v2450 = vpack.c.b16 %v2394, %v2393
    %v2451 = vpack.c.b16 %v2396, %v2395
    %v2452 = vpack.c.b16 %v2398, %v2397
    %v2453 = vpack.c.b16 %v2400, %v2399
    %v2454 = vpack.c.b16 %v2402, %v2401
    %v2455 = vpack.c.b16 %v2404, %v2403
    %v2456 = vpack.c.b16 %v2406, %v2405
    %v2457 = vpack.c.b16 %v2408, %v2407
    %v2458 = vpack.c.b16 %v2410, %v2409
    %v2459 = vpack.c.b16 %v2412, %v2411
    %v2460 = vpack.c.b16 %v2414, %v2413
    %v2461 = vpack.c.b16 %v2416, %v2415
    %v2462 = vpack.c.b16 %v2418, %v2417
    %v2463 = vpack.c.b16 %v2420, %v2419
    %v2464 = vpack.c.b16 %v2422, %v2421
    %v2465 = vpack.c.b16 %v2424, %v2423
    %v2466 = vpack.c.b16 %v2426, %v2425
    %2507 = vmatprep.subr.bf16.mxu0 0
    %2508 = vmatpush1.bf16.msra.mxu0 %v2427
    %2509 = vmatprep.subr.bf16.mxu0 0
    %2510 = vmatpush1.bf16.msra.mxu0 %v2428
    %2511 = vmatprep.subr.bf16.mxu0 0
    %2512 = vmatpush1.bf16.msra.mxu0 %v2429
    %2513 = vmatprep.subr.bf16.mxu0 0
    %2514 = vmatpush1.bf16.msra.mxu0 %v2430
    %2515 = vmatprep.subr.bf16.mxu0 0
    %2516 = vmatpush1.bf16.msra.mxu0 %v2431
    %2517 = vmatprep.subr.bf16.mxu0 0
    %2518 = vmatpush1.bf16.msra.mxu0 %v2432
    %2519 = vmatprep.subr.bf16.mxu0 0
    %2520 = vmatpush1.bf16.msra.mxu0 %v2433
    %2521 = vmatprep.subr.bf16.mxu0 0
    %2522 = vmatpush1.bf16.msra.mxu0 %v2434
    %2523 = vmatprep.subr.bf16.mxu0 0
    %2524 = vmatpush1.bf16.msra.mxu0 %v2435
    %2525 = vmatprep.subr.bf16.mxu0 0
    %2526 = vmatpush1.bf16.msra.mxu0 %v2436
    %2527 = vmatprep.subr.bf16.mxu0 0
    %2528 = vmatpush1.bf16.msra.mxu0 %v2437
    %2529 = vmatprep.subr.bf16.mxu0 0
    %2530 = vmatpush1.bf16.msra.mxu0 %v2438
    %2531 = vmatprep.subr.bf16.mxu0 0
    %2532 = vmatpush1.bf16.msra.mxu0 %v2439
    %2533 = vmatprep.subr.bf16.mxu0 0
    %2534 = vmatpush1.bf16.msra.mxu0 %v2440
    %2535 = vmatprep.subr.bf16.mxu0 0
    %2536 = vmatpush1.bf16.msra.mxu0 %v2441
    %2537 = vmatprep.subr.bf16.mxu0 0
    %2538 = vmatpush1.bf16.msra.mxu0 %v2442
    %2539 = vmatprep.mubr.bf16.mxu0 %v2176
    %2540 = vmatmul.mubr.bf16.gmra.mrb[0].mxu0 %v2175
    %v2541 = vpop.f32.mrb[0].mxu0
    %v2542 = vadd.f32 %v2265, %v2541
    %v2543 = vpop.f32.mrb[0].mxu0
    %v2544 = vpop.f32.mrb[0].mxu0
    %v2545 = vpop.f32.mrb[0].mxu0
    %2546 = vdwg.mxu0
    %2547 = vmatprep.subr.bf16.mxu0 0
    %2548 = vmatpush1.bf16.msra.mxu0 %v2443
    %2549 = vmatprep.subr.bf16.mxu0 0
    %2550 = vmatpush1.bf16.msra.mxu0 %v2444
    %2551 = vmatprep.subr.bf16.mxu0 0
    %2552 = vmatpush1.bf16.msra.mxu0 %v2445
    %2553 = vmatprep.subr.bf16.mxu0 0
    %2554 = vmatpush1.bf16.msra.mxu0 %v2446
    %2555 = vmatprep.subr.bf16.mxu0 0
    %2556 = vmatpush1.bf16.msra.mxu0 %v2447
    %2557 = vmatprep.subr.bf16.mxu0 0
    %2558 = vmatpush1.bf16.msra.mxu0 %v2448
    %2559 = vmatprep.subr.bf16.mxu0 0
    %2560 = vmatpush1.bf16.msra.mxu0 %v2449
    %2561 = vmatprep.subr.bf16.mxu0 0
    %2562 = vmatpush1.bf16.msra.mxu0 %v2450
    %2563 = vmatprep.subr.bf16.mxu0 0
    %2564 = vmatpush1.bf16.msra.mxu0 %v2451
    %2565 = vmatprep.subr.bf16.mxu0 0
    %2566 = vmatpush1.bf16.msra.mxu0 %v2452
    %2567 = vmatprep.subr.bf16.mxu0 0
    %2568 = vmatpush1.bf16.msra.mxu0 %v2453
    %2569 = vmatprep.subr.bf16.mxu0 0
    %2570 = vmatpush1.bf16.msra.mxu0 %v2454
    %2571 = vmatprep.subr.bf16.mxu0 0
    %2572 = vmatpush1.bf16.msra.mxu0 %v2455
    %2573 = vmatprep.subr.bf16.mxu0 0
    %2574 = vmatpush1.bf16.msra.mxu0 %v2456
    %2575 = vmatprep.subr.bf16.mxu0 0
    %2576 = vmatpush1.bf16.msra.mxu0 %v2457
    %2577 = vmatprep.subr.bf16.mxu0 0
    %2578 = vmatpush1.bf16.msra.mxu0 %v2458
    %2579 = vmatprep.mubr.bf16.mxu0 %v2178
    %2580 = vmatmul.mubr.bf16.gmra.mrb[0].mxu0 %v2177
    %v2581 = vpop.f32.mrb[0].mxu0
    %v2582 = vadd.f32 %v2542, %v2581
    %v2583 = vpop.f32.mrb[0].mxu0
    %v2584 = vpop.f32.mrb[0].mxu0
    %v2585 = vpop.f32.mrb[0].mxu0
    %2586 = vdwg.mxu0
    %2587 = vmatprep.subr.bf16.mxu0 0
    %2588 = vmatpush1.bf16.msra.mxu0 %v2459
    %2589 = vmatprep.subr.bf16.mxu0 0
    %2590 = vmatpush1.bf16.msra.mxu0 %v2460
    %2591 = vmatprep.subr.bf16.mxu0 0
    %2592 = vmatpush1.bf16.msra.mxu0 %v2461
    %2593 = vmatprep.subr.bf16.mxu0 0
    %2594 = vmatpush1.bf16.msra.mxu0 %v2462
    %2595 = vmatprep.subr.bf16.mxu0 0
    %2596 = vmatpush1.bf16.msra.mxu0 %v2463
    %2597 = vmatprep.subr.bf16.mxu0 0
    %2598 = vmatpush1.bf16.msra.mxu0 %v2464
    %2599 = vmatprep.subr.bf16.mxu0 0
    %2600 = vmatpush1.bf16.msra.mxu0 %v2465
    %2601 = vmatprep.subr.bf16.mxu0 0
    %2602 = vmatpush1.bf16.msra.mxu0 %v2466
    %2603 = vmatprep.subr.bf16.mxu0 0
    %2604 = vmatpush1.bf16.msra.mxu0 0
    %2605 = vmatprep.subr.bf16.mxu0 0
    %2606 = vmatpush1.bf16.msra.mxu0 0
    %2607 = vmatprep.subr.bf16.mxu0 0
    %2608 = vmatpush1.bf16.msra.mxu0 0
    %2609 = vmatprep.subr.bf16.mxu0 0
    %2610 = vmatpush1.bf16.msra.mxu0 0
    %2611 = vmatprep.subr.bf16.mxu0 0
    %2612 = vmatpush1.bf16.msra.mxu0 0
    %2613 = vmatprep.subr.bf16.mxu0 0
    %2614 = vmatpush1.bf16.msra.mxu0 0
    %2615 = vmatprep.subr.bf16.mxu0 0
    %2616 = vmatpush1.bf16.msra.mxu0 0
    %2617 = vmatprep.subr.bf16.mxu0 0
    %2618 = vmatpush1.bf16.msra.mxu0 0
    %2619 = vmatprep.mubr.bf16.mxu0 0
    %2620 = vmatmul.mubr.bf16.gmra.mrb[0].mxu0 %v2179
    %v2621 = vpop.f32.mrb[0].mxu0
    %v2622 = vadd.f32 %v2582, %v2621
    %v2623 = vpop.f32.mrb[0].mxu0
    %v2624 = vpop.f32.mrb[0].mxu0
    %v2625 = vpop.f32.mrb[0].mxu0
    %2626 = vdwg.mxu0
    %v2627 = vtanh.pop %v2622
    %2628 = vst [vmem:[#allocation10] sm:$0xff] %v2627
    // Predicated region
    $region46: #{tpu_custom_call.1} parent=1 // pred_check
      _
    $region47: #{tpu_custom_call.1} parent=1 // pred_check_branch
      %2630 = sbr.rel (0) target = $region49
    $region48: #{tpu_custom_call.1} parent=1 // pred_region
      %s2632 = ssub.s32 128, 128
      %2633 = vsyncadd [#allocation4], %s2632
      %s2635 = sshll.u32 [#allocation10], 4
      %s2636 = int_to_ptr.vmem [resolvable:$true] %s2635
      %2638 = dma.vmem_to_hbm [thread:$0]  %s2636, 128, %s7, [#allocation4]
    $region49: #{tpu_custom_call.1} parent=1 // pred_fallthru
      _
    // Predicated region
    $region50: #{tpu_custom_call.1} parent=1 // pred_check
      _
    $region51: #{tpu_custom_call.1} parent=1 // pred_check_branch
      %2640 = sbr.rel (0) target = $region53
    $region52: #{tpu_custom_call.1} parent=1 // pred_region
      %2641 = dma.done [#allocation4], 128
    $region53: #{tpu_custom_call.1} parent=1 // pred_fallthru
      _
    %2642 = vsyncpa [#allocation3], 1
    %2643 = vsyncpa [#allocation6], 1
    %2644 = vsyncpa [#allocation9], 1
    %2645 = vsyncpa [#allocation4], 1

</llo_original>
